<compile_context>
chip_gen: v5e
topology: v5e:2x2
jax: 0.10.0
libtpu: 0.0.40
codegen_flags: <defaults>
</compile_context>

<pallas_src>
import functools

import jax
import jax.numpy as jnp
from jax.experimental import pallas as pl
from jax.experimental.pallas import tpu as pltpu


def _transformer_block_kernel(
    xq_ref,                 # (1, tq, C) f32   query rows for this tile
    xkv_ref,                # (1, T,  C) f32   full sequence (K/V source)
    wq_ref, wk_ref, wv_ref,  # (C, C) bf16 each; head h = columns [h*hs, (h+1)*hs)
    wo_ref, bo_ref,          # (C, C) bf16, (1, C) f32
    w1_ref, b1_ref,          # (C, 4C) bf16, (1, 4C) f32
    w2_ref, b2_ref,          # (4C, C) bf16, (1, C) f32
    g1_ref, be1_ref,         # (1, C) f32   LayerNorm 1
    g2_ref, be2_ref,         # (1, C) f32   LayerNorm 2
    o_ref,                   # (1, tq, C) f32
    mh_ref,                  # VMEM scratch (tq, C) f32 — multi-head output slab
    *,
    num_heads,
):
    xq = xq_ref[0]                      # (tq, C) f32
    xkv = xkv_ref[0]                    # (T,  C) f32
    tq, C = xq.shape
    T = xkv.shape[0]
    H = num_heads
    hs = C // H
    scale = 1.0 / (float(C) ** 0.5)     # torch module divides by sqrt(io_size)

    xq_b = xq.astype(jnp.bfloat16)
    xkv_b = xkv.astype(jnp.bfloat16)

    # --- fused (all-heads) projections: wide MXU matmuls, f32 accumulation ---
    q_all = jnp.dot(xq_b, wq_ref[...], preferred_element_type=jnp.float32)    # (tq, C)
    k_all = jnp.dot(xkv_b, wk_ref[...], preferred_element_type=jnp.float32)   # (T,  C)
    v_all = jnp.dot(xkv_b, wv_ref[...], preferred_element_type=jnp.float32)   # (T,  C)

    # Pre-scale q in f32 (one (tq, C) multiply instead of a (tq, T) multiply per head).
    q_b = (q_all * scale).astype(jnp.bfloat16)
    k_b = k_all.astype(jnp.bfloat16)
    v_b = v_all.astype(jnp.bfloat16)

    # Causal mask for this query tile (rows are offset by the tile position).
    q0 = pl.program_id(1) * tq
    row = q0 + jax.lax.broadcasted_iota(jnp.int32, (tq, T), 0)
    col = jax.lax.broadcasted_iota(jnp.int32, (tq, T), 1)
    causal = row >= col

    # --- per-head causal attention; head outputs go into a lane-dense VMEM slab ---
    for h in range(H):
        sl = slice(h * hs, (h + 1) * hs)
        s = jnp.dot(q_b[:, sl], k_b[:, sl].T,
                    preferred_element_type=jnp.float32)            # (tq, T) f32
        s = jnp.where(causal, s, -1e30)                            # finite mask (no inf math)
        s = s - jnp.max(s, axis=-1, keepdims=True)
        p = jnp.exp(s)
        p = p * pl.reciprocal(jnp.sum(p, axis=-1, keepdims=True), approx=True)
        mh_ref[:, sl] = jnp.dot(p.astype(jnp.bfloat16), v_b[:, sl],
                                preferred_element_type=jnp.float32)

    mh = jnp.dot(mh_ref[...].astype(jnp.bfloat16), wo_ref[...],
                 preferred_element_type=jnp.float32) + bo_ref[0]
    # TODO(synk): nn.Dropout layers are identity here (inference / dropout == 0).

    def layer_norm(y, gamma, beta, eps=1e-5):
        mu = jnp.mean(y, axis=-1, keepdims=True)
        var = jnp.mean((y - mu) ** 2, axis=-1, keepdims=True)      # biased var (torch)
        return (y - mu) * jax.lax.rsqrt(var + eps) * gamma + beta

    # --- post-LN residual 1 ---
    h1 = layer_norm(xq + mh, g1_ref[0], be1_ref[0])

    # --- feed-forward (bf16 matmul inputs, f32 accumulate / epilogue) ---
    ff = jnp.dot(h1.astype(jnp.bfloat16), w1_ref[...],
                 preferred_element_type=jnp.float32) + b1_ref[0]
    ff = jnp.maximum(ff, 0.0)                                      # ReLU
    ff = jnp.dot(ff.astype(jnp.bfloat16), w2_ref[...],
                 preferred_element_type=jnp.float32) + b2_ref[0]

    # --- post-LN residual 2 ---
    h2 = layer_norm(h1 + ff, g2_ref[0], be2_ref[0])
    o_ref[0] = h2.astype(o_ref.dtype)


def _pick_q_tile(T):
    for cand in (256, 128):
        if T % cand == 0:
            return cand
    return T


def transformer_block(x, params, num_heads):
    """x: (B, T, C) float32. params: dict of f32 weights (see __main__)."""
    B, T, C = x.shape
    assert C % num_heads == 0

    tq = _pick_q_tile(T)
    num_q_tiles = T // tq

    bf16 = jnp.bfloat16
    wq = params["wq"].astype(bf16)
    wk = params["wk"].astype(bf16)
    wv = params["wv"].astype(bf16)
    wo = params["wo"].astype(bf16)
    w1 = params["w1"].astype(bf16)
    w2 = params["w2"].astype(bf16)

    def const(shape):
        # Constant index_map across the grid -> Pallas does not re-fetch these blocks.
        return pl.BlockSpec(shape, lambda b, t: (0,) * len(shape))

    kernel = functools.partial(_transformer_block_kernel, num_heads=num_heads)

    return pl.pallas_call(
        kernel,
        out_shape=jax.ShapeDtypeStruct((B, T, C), jnp.float32),
        grid_spec=pltpu.PrefetchScalarGridSpec(
            num_scalar_prefetch=0,
            grid=(B, num_q_tiles),
            in_specs=[
                pl.BlockSpec((1, tq, C), lambda b, t: (b, t, 0)),   # x: query tile
                pl.BlockSpec((1, T, C), lambda b, t: (b, 0, 0)),    # x: full seq (K/V)
                const((C, C)),                                      # wq (bf16)
                const((C, C)),                                      # wk (bf16)
                const((C, C)),                                      # wv (bf16)
                const((C, C)),                                      # wo (bf16)
                const((1, C)),                                      # bo
                const((C, 4 * C)),                                  # w1 (bf16)
                const((1, 4 * C)),                                  # b1
                const((4 * C, C)),                                  # w2 (bf16)
                const((1, C)),                                      # b2
                const((1, C)),                                      # ln1 gamma
                const((1, C)),                                      # ln1 beta
                const((1, C)),                                      # ln2 gamma
                const((1, C)),                                      # ln2 beta
            ],
            out_specs=pl.BlockSpec((1, tq, C), lambda b, t: (b, t, 0)),
            scratch_shapes=[pltpu.VMEM((tq, C), jnp.float32)],      # multi-head slab
        ),
        compiler_params=pltpu.CompilerParams(
            dimension_semantics=("parallel", "parallel"),
            vmem_limit_bytes=48 * 1024 * 1024,
        ),
    )(
        x, x,
        wq, wk, wv,
        wo, params["bo"],
        w1, params["b1"],
        w2, params["b2"],
        params["g1"], params["be1"],
        params["g2"], params["be2"],
    )


def _reference(x, p, num_heads):
    """Pure-JAX f32 reference mirroring the PyTorch forward (eval mode)."""
    B, T, C = x.shape
    hs = C // num_heads
    scale = 1.0 / (float(C) ** 0.5)
    causal = jnp.tril(jnp.ones((T, T), bool))

    q = x @ p["wq"]
    k = x @ p["wk"]
    v = x @ p["wv"]
    heads = []
    for h in range(num_heads):
        sl = slice(h * hs, (h + 1) * hs)
        att = (q[..., sl] @ jnp.swapaxes(k[..., sl], -1, -2)) * scale
        att = jnp.where(causal, att, -jnp.inf)
        att = jax.nn.softmax(att, axis=-1)
        heads.append(att @ v[..., sl])
    mh = jnp.concatenate(heads, axis=-1) @ p["wo"] + p["bo"][0]

    def ln(y, g, b, eps=1e-5):
        mu = jnp.mean(y, -1, keepdims=True)
        var = jnp.mean((y - mu) ** 2, -1, keepdims=True)
        return (y - mu) / jnp.sqrt(var + eps) * g + b

    h1 = ln(x + mh, p["g1"][0], p["be1"][0])
    ff = jnp.maximum(h1 @ p["w1"] + p["b1"][0], 0.0) @ p["w2"] + p["b2"][0]
    return ln(h1 + ff, p["g2"][0], p["be2"][0])


if __name__ == "__main__":
    B, T, C, H = 2, 8, 32, 4

    key = jax.random.PRNGKey(0)
    ks = jax.random.split(key, 10)
    s = 0.02
    params = {
        "wq": jax.random.normal(ks[0], (C, C), jnp.float32) * s,
        "wk": jax.random.normal(ks[1], (C, C), jnp.float32) * s,
        "wv": jax.random.normal(ks[2], (C, C), jnp.float32) * s,
        "wo": jax.random.normal(ks[3], (C, C), jnp.float32) * s,
        "bo": jax.random.normal(ks[4], (1, C), jnp.float32) * s,
        "w1": jax.random.normal(ks[5], (C, 4 * C), jnp.float32) * s,
        "b1": jax.random.normal(ks[6], (1, 4 * C), jnp.float32) * s,
        "w2": jax.random.normal(ks[7], (4 * C, C), jnp.float32) * s,
        "b2": jax.random.normal(ks[8], (1, C), jnp.float32) * s,
        "g1": jnp.ones((1, C), jnp.float32),
        "be1": jnp.zeros((1, C), jnp.float32),
        "g2": jnp.ones((1, C), jnp.float32),
        "be2": jnp.zeros((1, C), jnp.float32),
    }
    x = jax.random.normal(ks[9], (B, T, C), jnp.float32)

    out = jax.block_until_ready(transformer_block(x, params, num_heads=H))
    ref = jax.block_until_ready(_reference(x, params, num_heads=H))

    assert out.shape == (B, T, C)
    assert bool(jnp.all(jnp.isfinite(out)))
    max_err = jnp.max(jnp.abs(out - ref))
    # bf16 matmul inputs (f32 accumulation) vs. pure-f32 reference -> relaxed tolerance.
    assert bool(max_err < 2e-2), f"mismatch vs reference: max abs err = {max_err}"
    print("KERNEL_OK")
</pallas_src>

<mosaic_0001>
module attributes {stable_mosaic.version = 11 : i64} {
  func.func @_transformer_block_kernel(%arg0: i32, %arg1: i32, %arg2: memref<1x8x32xf32, #tpu.memory_space<vmem>>, %arg3: memref<1x8x32xf32, #tpu.memory_space<vmem>>, %arg4: memref<32x32xbf16, #tpu.memory_space<vmem>>, %arg5: memref<32x32xbf16, #tpu.memory_space<vmem>>, %arg6: memref<32x32xbf16, #tpu.memory_space<vmem>>, %arg7: memref<32x32xbf16, #tpu.memory_space<vmem>>, %arg8: memref<1x32xf32, #tpu.memory_space<vmem>>, %arg9: memref<32x128xbf16, #tpu.memory_space<vmem>>, %arg10: memref<1x128xf32, #tpu.memory_space<vmem>>, %arg11: memref<128x32xbf16, #tpu.memory_space<vmem>>, %arg12: memref<1x32xf32, #tpu.memory_space<vmem>>, %arg13: memref<1x32xf32, #tpu.memory_space<vmem>>, %arg14: memref<1x32xf32, #tpu.memory_space<vmem>>, %arg15: memref<1x32xf32, #tpu.memory_space<vmem>>, %arg16: memref<1x32xf32, #tpu.memory_space<vmem>>, %arg17: memref<1x8x32xf32, #tpu.memory_space<vmem>>, %arg18: memref<8x32xf32, #tpu.memory_space<vmem>>) attributes {dimension_semantics = [#tpu.dimension_semantics<parallel>, #tpu.dimension_semantics<parallel>], iteration_bounds = array<i64: 2, 1>, scalar_prefetch = 0 : i64, scratch_operands = 1 : i64, tpu.core_type = #tpu.core_type<tc>, window_params = [{transform_indices = @transform_0, window_bounds = array<i64: 1, 8, 32>}, {transform_indices = @transform_1, window_bounds = array<i64: 1, 8, 32>}, {pipeline_mode = #tpu.pipeline_mode<synchronous>, transform_indices = @transform_2, window_bounds = array<i64: 32, 32>}, {pipeline_mode = #tpu.pipeline_mode<synchronous>, transform_indices = @transform_3, window_bounds = array<i64: 32, 32>}, {pipeline_mode = #tpu.pipeline_mode<synchronous>, transform_indices = @transform_4, window_bounds = array<i64: 32, 32>}, {pipeline_mode = #tpu.pipeline_mode<synchronous>, transform_indices = @transform_5, window_bounds = array<i64: 32, 32>}, {pipeline_mode = #tpu.pipeline_mode<synchronous>, transform_indices = @transform_6, window_bounds = array<i64: 1, 32>}, {pipeline_mode = #tpu.pipeline_mode<synchronous>, transform_indices = @transform_7, window_bounds = array<i64: 32, 128>}, {pipeline_mode = #tpu.pipeline_mode<synchronous>, transform_indices = @transform_8, window_bounds = array<i64: 1, 128>}, {pipeline_mode = #tpu.pipeline_mode<synchronous>, transform_indices = @transform_9, window_bounds = array<i64: 128, 32>}, {pipeline_mode = #tpu.pipeline_mode<synchronous>, transform_indices = @transform_10, window_bounds = array<i64: 1, 32>}, {pipeline_mode = #tpu.pipeline_mode<synchronous>, transform_indices = @transform_11, window_bounds = array<i64: 1, 32>}, {pipeline_mode = #tpu.pipeline_mode<synchronous>, transform_indices = @transform_12, window_bounds = array<i64: 1, 32>}, {pipeline_mode = #tpu.pipeline_mode<synchronous>, transform_indices = @transform_13, window_bounds = array<i64: 1, 32>}, {pipeline_mode = #tpu.pipeline_mode<synchronous>, transform_indices = @transform_14, window_bounds = array<i64: 1, 32>}, {transform_indices = @transform_15, window_bounds = array<i64: 1, 8, 32>}]} {
    %c0 = arith.constant 0 : index
    %c0_0 = arith.constant 0 : index
    %c0_1 = arith.constant 0 : index
    %0 = vector.load %arg2[%c0, %c0_0, %c0_1] : memref<1x8x32xf32, #tpu.memory_space<vmem>>, vector<1x8x32xf32>
    %1 = vector.shape_cast %0 : vector<1x8x32xf32> to vector<8x32xf32>
    %c0_2 = arith.constant 0 : index
    %c0_3 = arith.constant 0 : index
    %c0_4 = arith.constant 0 : index
    %2 = vector.load %arg3[%c0_2, %c0_3, %c0_4] : memref<1x8x32xf32, #tpu.memory_space<vmem>>, vector<1x8x32xf32>
    %3 = vector.shape_cast %2 : vector<1x8x32xf32> to vector<8x32xf32>
    %4 = arith.truncf %1 : vector<8x32xf32> to vector<8x32xbf16>
    %5 = arith.truncf %3 : vector<8x32xf32> to vector<8x32xbf16>
    %c0_5 = arith.constant 0 : index
    %c0_6 = arith.constant 0 : index
    %6 = vector.load %arg4[%c0_5, %c0_6] : memref<32x32xbf16, #tpu.memory_space<vmem>>, vector<32x32xbf16>
    %cst = arith.constant dense<0.000000e+00> : vector<8x32xf32>
    %7 = tpu.matmul %4, %6, %cst {dimension_numbers = #tpu.dot_dimension_numbers<[1], [0], [0], [1], [0, 0, 1, 1], [], []>} : vector<8x32xbf16>, vector<32x32xbf16>, vector<8x32xf32> -> vector<8x32xf32>
    %c0_7 = arith.constant 0 : index
    %c0_8 = arith.constant 0 : index
    %8 = vector.load %arg5[%c0_7, %c0_8] : memref<32x32xbf16, #tpu.memory_space<vmem>>, vector<32x32xbf16>
    %cst_9 = arith.constant dense<0.000000e+00> : vector<8x32xf32>
    %9 = tpu.matmul %5, %8, %cst_9 {dimension_numbers = #tpu.dot_dimension_numbers<[1], [0], [0], [1], [0, 0, 1, 1], [], []>} : vector<8x32xbf16>, vector<32x32xbf16>, vector<8x32xf32> -> vector<8x32xf32>
    %c0_10 = arith.constant 0 : index
    %c0_11 = arith.constant 0 : index
    %10 = vector.load %arg6[%c0_10, %c0_11] : memref<32x32xbf16, #tpu.memory_space<vmem>>, vector<32x32xbf16>
    %cst_12 = arith.constant dense<0.000000e+00> : vector<8x32xf32>
    %11 = tpu.matmul %5, %10, %cst_12 {dimension_numbers = #tpu.dot_dimension_numbers<[1], [0], [0], [1], [0, 0, 1, 1], [], []>} : vector<8x32xbf16>, vector<32x32xbf16>, vector<8x32xf32> -> vector<8x32xf32>
    %cst_13 = arith.constant 0.176776692 : f32
    %12 = vector.broadcast %cst_13 : f32 to vector<8x32xf32>
    %13 = arith.mulf %7, %12 : vector<8x32xf32>
    %14 = arith.truncf %13 : vector<8x32xf32> to vector<8x32xbf16>
    %15 = arith.truncf %9 : vector<8x32xf32> to vector<8x32xbf16>
    %16 = arith.truncf %11 : vector<8x32xf32> to vector<8x32xbf16>
    %c8_i32 = arith.constant 8 : i32
    %17 = arith.muli %arg1, %c8_i32 : i32
    %18 = tpu.iota {dimensions = array<i32: 0>} : vector<8x8xi32>
    %19 = vector.broadcast %17 : i32 to vector<8x8xi32>
    %20 = arith.addi %19, %18 : vector<8x8xi32>
    %21 = tpu.iota {dimensions = array<i32: 1>} : vector<8x8xi32>
    %22 = arith.cmpi sge, %20, %21 : vector<8x8xi32>
    %23 = vector.extract_strided_slice %14 {offsets = [0, 0], sizes = [8, 8], strides = [1, 1]} : vector<8x32xbf16> to vector<8x8xbf16>
    %24 = vector.extract_strided_slice %15 {offsets = [0, 0], sizes = [8, 8], strides = [1, 1]} : vector<8x32xbf16> to vector<8x8xbf16>
    %25 = tpu.transpose %24, [1, 0] : vector<8x8xbf16> -> vector<8x8xbf16>
    %cst_14 = arith.constant dense<0.000000e+00> : vector<8x8xf32>
    %26 = tpu.matmul %23, %25, %cst_14 {dimension_numbers = #tpu.dot_dimension_numbers<[1], [0], [0], [1], [0, 0, 1, 1], [], []>} : vector<8x8xbf16>, vector<8x8xbf16>, vector<8x8xf32> -> vector<8x8xf32>
    %cst_15 = arith.constant -1.000000e+30 : f32
    %27 = vector.broadcast %cst_15 : f32 to vector<8x8xf32>
    %28 = arith.select %22, %26, %27 : vector<8x8xi1>, vector<8x8xf32>
    %cst_16 = arith.constant dense<0xFF800000> : vector<8xf32>
    %29 = vector.multi_reduction <maximumf>, %28, %cst_16 [1] : vector<8x8xf32> to vector<8xf32>
    %30 = vector.shape_cast %29 : vector<8xf32> to vector<8x1xf32>
    %31 = vector.broadcast %30 : vector<8x1xf32> to vector<8x8xf32>
    %32 = arith.subf %28, %31 : vector<8x8xf32>
    %33 = math.exp %32 : vector<8x8xf32>
    %cst_17 = arith.constant dense<0.000000e+00> : vector<8xf32>
    %34 = vector.multi_reduction <add>, %33, %cst_17 [1] : vector<8x8xf32> to vector<8xf32>
    %35 = vector.shape_cast %34 : vector<8xf32> to vector<8x1xf32>
    %36 = tpu.reciprocal %35 {approx = true} : vector<8x1xf32> -> vector<8x1xf32>
    %37 = vector.broadcast %36 : vector<8x1xf32> to vector<8x8xf32>
    %38 = arith.mulf %33, %37 : vector<8x8xf32>
    %39 = arith.truncf %38 : vector<8x8xf32> to vector<8x8xbf16>
    %40 = vector.extract_strided_slice %16 {offsets = [0, 0], sizes = [8, 8], strides = [1, 1]} : vector<8x32xbf16> to vector<8x8xbf16>
    %cst_18 = arith.constant dense<0.000000e+00> : vector<8x8xf32>
    %41 = tpu.matmul %39, %40, %cst_18 {dimension_numbers = #tpu.dot_dimension_numbers<[1], [0], [0], [1], [0, 0, 1, 1], [], []>} : vector<8x8xbf16>, vector<8x8xbf16>, vector<8x8xf32> -> vector<8x8xf32>
    %c0_19 = arith.constant 0 : index
    %c0_20 = arith.constant 0 : index
    %42 = vector.load %arg18[%c0_19, %c0_20] : memref<8x32xf32, #tpu.memory_space<vmem>>, vector<8x8xf32>
    tpu.vector_store %arg18[%c0_19, %c0_20], %41 {strides = array<i32>} : memref<8x32xf32, #tpu.memory_space<vmem>>, vector<8x8xf32>,
    %43 = vector.extract_strided_slice %14 {offsets = [0, 8], sizes = [8, 8], strides = [1, 1]} : vector<8x32xbf16> to vector<8x8xbf16>
    %44 = vector.extract_strided_slice %15 {offsets = [0, 8], sizes = [8, 8], strides = [1, 1]} : vector<8x32xbf16> to vector<8x8xbf16>
    %45 = tpu.transpose %44, [1, 0] : vector<8x8xbf16> -> vector<8x8xbf16>
    %cst_21 = arith.constant dense<0.000000e+00> : vector<8x8xf32>
    %46 = tpu.matmul %43, %45, %cst_21 {dimension_numbers = #tpu.dot_dimension_numbers<[1], [0], [0], [1], [0, 0, 1, 1], [], []>} : vector<8x8xbf16>, vector<8x8xbf16>, vector<8x8xf32> -> vector<8x8xf32>
    %cst_22 = arith.constant -1.000000e+30 : f32
    %47 = vector.broadcast %cst_22 : f32 to vector<8x8xf32>
    %48 = arith.select %22, %46, %47 : vector<8x8xi1>, vector<8x8xf32>
    %cst_23 = arith.constant dense<0xFF800000> : vector<8xf32>
    %49 = vector.multi_reduction <maximumf>, %48, %cst_23 [1] : vector<8x8xf32> to vector<8xf32>
    %50 = vector.shape_cast %49 : vector<8xf32> to vector<8x1xf32>
    %51 = vector.broadcast %50 : vector<8x1xf32> to vector<8x8xf32>
    %52 = arith.subf %48, %51 : vector<8x8xf32>
    %53 = math.exp %52 : vector<8x8xf32>
    %cst_24 = arith.constant dense<0.000000e+00> : vector<8xf32>
    %54 = vector.multi_reduction <add>, %53, %cst_24 [1] : vector<8x8xf32> to vector<8xf32>
    %55 = vector.shape_cast %54 : vector<8xf32> to vector<8x1xf32>
    %56 = tpu.reciprocal %55 {approx = true} : vector<8x1xf32> -> vector<8x1xf32>
    %57 = vector.broadcast %56 : vector<8x1xf32> to vector<8x8xf32>
    %58 = arith.mulf %53, %57 : vector<8x8xf32>
    %59 = arith.truncf %58 : vector<8x8xf32> to vector<8x8xbf16>
    %60 = vector.extract_strided_slice %16 {offsets = [0, 8], sizes = [8, 8], strides = [1, 1]} : vector<8x32xbf16> to vector<8x8xbf16>
    %cst_25 = arith.constant dense<0.000000e+00> : vector<8x8xf32>
    %61 = tpu.matmul %59, %60, %cst_25 {dimension_numbers = #tpu.dot_dimension_numbers<[1], [0], [0], [1], [0, 0, 1, 1], [], []>} : vector<8x8xbf16>, vector<8x8xbf16>, vector<8x8xf32> -> vector<8x8xf32>
    %c0_26 = arith.constant 0 : index
    %c8 = arith.constant 8 : index
    %62 = vector.load %arg18[%c0_26, %c8] : memref<8x32xf32, #tpu.memory_space<vmem>>, vector<8x8xf32>
    tpu.vector_store %arg18[%c0_26, %c8], %61 {strides = array<i32>} : memref<8x32xf32, #tpu.memory_space<vmem>>, vector<8x8xf32>,
    %63 = vector.extract_strided_slice %14 {offsets = [0, 16], sizes = [8, 8], strides = [1, 1]} : vector<8x32xbf16> to vector<8x8xbf16>
    %64 = vector.extract_strided_slice %15 {offsets = [0, 16], sizes = [8, 8], strides = [1, 1]} : vector<8x32xbf16> to vector<8x8xbf16>
    %65 = tpu.transpose %64, [1, 0] : vector<8x8xbf16> -> vector<8x8xbf16>
    %cst_27 = arith.constant dense<0.000000e+00> : vector<8x8xf32>
    %66 = tpu.matmul %63, %65, %cst_27 {dimension_numbers = #tpu.dot_dimension_numbers<[1], [0], [0], [1], [0, 0, 1, 1], [], []>} : vector<8x8xbf16>, vector<8x8xbf16>, vector<8x8xf32> -> vector<8x8xf32>
    %cst_28 = arith.constant -1.000000e+30 : f32
    %67 = vector.broadcast %cst_28 : f32 to vector<8x8xf32>
    %68 = arith.select %22, %66, %67 : vector<8x8xi1>, vector<8x8xf32>
    %cst_29 = arith.constant dense<0xFF800000> : vector<8xf32>
    %69 = vector.multi_reduction <maximumf>, %68, %cst_29 [1] : vector<8x8xf32> to vector<8xf32>
    %70 = vector.shape_cast %69 : vector<8xf32> to vector<8x1xf32>
    %71 = vector.broadcast %70 : vector<8x1xf32> to vector<8x8xf32>
    %72 = arith.subf %68, %71 : vector<8x8xf32>
    %73 = math.exp %72 : vector<8x8xf32>
    %cst_30 = arith.constant dense<0.000000e+00> : vector<8xf32>
    %74 = vector.multi_reduction <add>, %73, %cst_30 [1] : vector<8x8xf32> to vector<8xf32>
    %75 = vector.shape_cast %74 : vector<8xf32> to vector<8x1xf32>
    %76 = tpu.reciprocal %75 {approx = true} : vector<8x1xf32> -> vector<8x1xf32>
    %77 = vector.broadcast %76 : vector<8x1xf32> to vector<8x8xf32>
    %78 = arith.mulf %73, %77 : vector<8x8xf32>
    %79 = arith.truncf %78 : vector<8x8xf32> to vector<8x8xbf16>
    %80 = vector.extract_strided_slice %16 {offsets = [0, 16], sizes = [8, 8], strides = [1, 1]} : vector<8x32xbf16> to vector<8x8xbf16>
    %cst_31 = arith.constant dense<0.000000e+00> : vector<8x8xf32>
    %81 = tpu.matmul %79, %80, %cst_31 {dimension_numbers = #tpu.dot_dimension_numbers<[1], [0], [0], [1], [0, 0, 1, 1], [], []>} : vector<8x8xbf16>, vector<8x8xbf16>, vector<8x8xf32> -> vector<8x8xf32>
    %c0_32 = arith.constant 0 : index
    %c16 = arith.constant 16 : index
    %82 = vector.load %arg18[%c0_32, %c16] : memref<8x32xf32, #tpu.memory_space<vmem>>, vector<8x8xf32>
    tpu.vector_store %arg18[%c0_32, %c16], %81 {strides = array<i32>} : memref<8x32xf32, #tpu.memory_space<vmem>>, vector<8x8xf32>,
    %83 = vector.extract_strided_slice %14 {offsets = [0, 24], sizes = [8, 8], strides = [1, 1]} : vector<8x32xbf16> to vector<8x8xbf16>
    %84 = vector.extract_strided_slice %15 {offsets = [0, 24], sizes = [8, 8], strides = [1, 1]} : vector<8x32xbf16> to vector<8x8xbf16>
    %85 = tpu.transpose %84, [1, 0] : vector<8x8xbf16> -> vector<8x8xbf16>
    %cst_33 = arith.constant dense<0.000000e+00> : vector<8x8xf32>
    %86 = tpu.matmul %83, %85, %cst_33 {dimension_numbers = #tpu.dot_dimension_numbers<[1], [0], [0], [1], [0, 0, 1, 1], [], []>} : vector<8x8xbf16>, vector<8x8xbf16>, vector<8x8xf32> -> vector<8x8xf32>
    %cst_34 = arith.constant -1.000000e+30 : f32
    %87 = vector.broadcast %cst_34 : f32 to vector<8x8xf32>
    %88 = arith.select %22, %86, %87 : vector<8x8xi1>, vector<8x8xf32>
    %cst_35 = arith.constant dense<0xFF800000> : vector<8xf32>
    %89 = vector.multi_reduction <maximumf>, %88, %cst_35 [1] : vector<8x8xf32> to vector<8xf32>
    %90 = vector.shape_cast %89 : vector<8xf32> to vector<8x1xf32>
    %91 = vector.broadcast %90 : vector<8x1xf32> to vector<8x8xf32>
    %92 = arith.subf %88, %91 : vector<8x8xf32>
    %93 = math.exp %92 : vector<8x8xf32>
    %cst_36 = arith.constant dense<0.000000e+00> : vector<8xf32>
    %94 = vector.multi_reduction <add>, %93, %cst_36 [1] : vector<8x8xf32> to vector<8xf32>
    %95 = vector.shape_cast %94 : vector<8xf32> to vector<8x1xf32>
    %96 = tpu.reciprocal %95 {approx = true} : vector<8x1xf32> -> vector<8x1xf32>
    %97 = vector.broadcast %96 : vector<8x1xf32> to vector<8x8xf32>
    %98 = arith.mulf %93, %97 : vector<8x8xf32>
    %99 = arith.truncf %98 : vector<8x8xf32> to vector<8x8xbf16>
    %100 = vector.extract_strided_slice %16 {offsets = [0, 24], sizes = [8, 8], strides = [1, 1]} : vector<8x32xbf16> to vector<8x8xbf16>
    %cst_37 = arith.constant dense<0.000000e+00> : vector<8x8xf32>
    %101 = tpu.matmul %99, %100, %cst_37 {dimension_numbers = #tpu.dot_dimension_numbers<[1], [0], [0], [1], [0, 0, 1, 1], [], []>} : vector<8x8xbf16>, vector<8x8xbf16>, vector<8x8xf32> -> vector<8x8xf32>
    %c0_38 = arith.constant 0 : index
    %c24 = arith.constant 24 : index
    %102 = vector.load %arg18[%c0_38, %c24] : memref<8x32xf32, #tpu.memory_space<vmem>>, vector<8x8xf32>
    tpu.vector_store %arg18[%c0_38, %c24], %101 {strides = array<i32>} : memref<8x32xf32, #tpu.memory_space<vmem>>, vector<8x8xf32>,
    %c0_39 = arith.constant 0 : index
    %c0_40 = arith.constant 0 : index
    %103 = vector.load %arg18[%c0_39, %c0_40] : memref<8x32xf32, #tpu.memory_space<vmem>>, vector<8x32xf32>
    %104 = arith.truncf %103 : vector<8x32xf32> to vector<8x32xbf16>
    %c0_41 = arith.constant 0 : index
    %c0_42 = arith.constant 0 : index
    %105 = vector.load %arg7[%c0_41, %c0_42] : memref<32x32xbf16, #tpu.memory_space<vmem>>, vector<32x32xbf16>
    %cst_43 = arith.constant dense<0.000000e+00> : vector<8x32xf32>
    %106 = tpu.matmul %104, %105, %cst_43 {dimension_numbers = #tpu.dot_dimension_numbers<[1], [0], [0], [1], [0, 0, 1, 1], [], []>} : vector<8x32xbf16>, vector<32x32xbf16>, vector<8x32xf32> -> vector<8x32xf32>
    %c0_44 = arith.constant 0 : index
    %c0_45 = arith.constant 0 : index
    %107 = vector.load %arg8[%c0_44, %c0_45] : memref<1x32xf32, #tpu.memory_space<vmem>>, vector<1x32xf32>
    %108 = vector.shape_cast %107 : vector<1x32xf32> to vector<32xf32>
    %109 = vector.shape_cast %108 : vector<32xf32> to vector<1x32xf32>
    %110 = vector.broadcast %109 : vector<1x32xf32> to vector<8x32xf32>
    %111 = arith.addf %106, %110 : vector<8x32xf32>
    %112 = arith.addf %1, %111 : vector<8x32xf32>
    %c0_46 = arith.constant 0 : index
    %c0_47 = arith.constant 0 : index
    %113 = vector.load %arg13[%c0_46, %c0_47] : memref<1x32xf32, #tpu.memory_space<vmem>>, vector<1x32xf32>
    %114 = vector.shape_cast %113 : vector<1x32xf32> to vector<32xf32>
    %c0_48 = arith.constant 0 : index
    %c0_49 = arith.constant 0 : index
    %115 = vector.load %arg14[%c0_48, %c0_49] : memref<1x32xf32, #tpu.memory_space<vmem>>, vector<1x32xf32>
    %116 = vector.shape_cast %115 : vector<1x32xf32> to vector<32xf32>
    %cst_50 = arith.constant dense<0.000000e+00> : vector<8xf32>
    %117 = vector.multi_reduction <add>, %112, %cst_50 [1] : vector<8x32xf32> to vector<8xf32>
    %118 = vector.shape_cast %117 : vector<8xf32> to vector<8x1xf32>
    %cst_51 = arith.constant 3.200000e+01 : f32
    %119 = vector.broadcast %cst_51 : f32 to vector<8x1xf32>
    %120 = arith.divf %118, %119 : vector<8x1xf32>
    %121 = vector.broadcast %120 : vector<8x1xf32> to vector<8x32xf32>
    %122 = arith.subf %112, %121 : vector<8x32xf32>
    %123 = arith.mulf %122, %122 : vector<8x32xf32>
    %cst_52 = arith.constant dense<0.000000e+00> : vector<8xf32>
    %124 = vector.multi_reduction <add>, %123, %cst_52 [1] : vector<8x32xf32> to vector<8xf32>
    %125 = vector.shape_cast %124 : vector<8xf32> to vector<8x1xf32>
    %cst_53 = arith.constant 3.200000e+01 : f32
    %126 = vector.broadcast %cst_53 : f32 to vector<8x1xf32>
    %127 = arith.divf %125, %126 : vector<8x1xf32>
    %128 = vector.broadcast %120 : vector<8x1xf32> to vector<8x32xf32>
    %129 = arith.subf %112, %128 : vector<8x32xf32>
    %cst_54 = arith.constant 9.99999974E-6 : f32
    %130 = vector.broadcast %cst_54 : f32 to vector<8x1xf32>
    %131 = arith.addf %127, %130 : vector<8x1xf32>
    %132 = math.rsqrt %131 : vector<8x1xf32>
    %133 = vector.broadcast %132 : vector<8x1xf32> to vector<8x32xf32>
    %134 = arith.mulf %129, %133 : vector<8x32xf32>
    %135 = vector.shape_cast %114 : vector<32xf32> to vector<1x32xf32>
    %136 = vector.broadcast %135 : vector<1x32xf32> to vector<8x32xf32>
    %137 = arith.mulf %134, %136 : vector<8x32xf32>
    %138 = vector.shape_cast %116 : vector<32xf32> to vector<1x32xf32>
    %139 = vector.broadcast %138 : vector<1x32xf32> to vector<8x32xf32>
    %140 = arith.addf %137, %139 : vector<8x32xf32>
    %141 = arith.truncf %140 : vector<8x32xf32> to vector<8x32xbf16>
    %c0_55 = arith.constant 0 : index
    %c0_56 = arith.constant 0 : index
    %142 = vector.load %arg9[%c0_55, %c0_56] : memref<32x128xbf16, #tpu.memory_space<vmem>>, vector<32x128xbf16>
    %cst_57 = arith.constant dense<0.000000e+00> : vector<8x128xf32>
    %143 = tpu.matmul %141, %142, %cst_57 {dimension_numbers = #tpu.dot_dimension_numbers<[1], [0], [0], [1], [0, 0, 1, 1], [], []>} : vector<8x32xbf16>, vector<32x128xbf16>, vector<8x128xf32> -> vector<8x128xf32>
    %c0_58 = arith.constant 0 : index
    %c0_59 = arith.constant 0 : index
    %144 = vector.load %arg10[%c0_58, %c0_59] : memref<1x128xf32, #tpu.memory_space<vmem>>, vector<1x128xf32>
    %145 = vector.shape_cast %144 : vector<1x128xf32> to vector<128xf32>
    %146 = vector.shape_cast %145 : vector<128xf32> to vector<1x128xf32>
    %147 = vector.broadcast %146 : vector<1x128xf32> to vector<8x128xf32>
    %148 = arith.addf %143, %147 : vector<8x128xf32>
    %cst_60 = arith.constant 0.000000e+00 : f32
    %149 = vector.broadcast %cst_60 : f32 to vector<8x128xf32>
    %150 = arith.maximumf %148, %149 : vector<8x128xf32>
    %151 = arith.truncf %150 : vector<8x128xf32> to vector<8x128xbf16>
    %c0_61 = arith.constant 0 : index
    %c0_62 = arith.constant 0 : index
    %152 = vector.load %arg11[%c0_61, %c0_62] : memref<128x32xbf16, #tpu.memory_space<vmem>>, vector<128x32xbf16>
    %cst_63 = arith.constant dense<0.000000e+00> : vector<8x32xf32>
    %153 = tpu.matmul %151, %152, %cst_63 {dimension_numbers = #tpu.dot_dimension_numbers<[1], [0], [0], [1], [0, 0, 1, 1], [], []>} : vector<8x128xbf16>, vector<128x32xbf16>, vector<8x32xf32> -> vector<8x32xf32>
    %c0_64 = arith.constant 0 : index
    %c0_65 = arith.constant 0 : index
    %154 = vector.load %arg12[%c0_64, %c0_65] : memref<1x32xf32, #tpu.memory_space<vmem>>, vector<1x32xf32>
    %155 = vector.shape_cast %154 : vector<1x32xf32> to vector<32xf32>
    %156 = vector.shape_cast %155 : vector<32xf32> to vector<1x32xf32>
    %157 = vector.broadcast %156 : vector<1x32xf32> to vector<8x32xf32>
    %158 = arith.addf %153, %157 : vector<8x32xf32>
    %159 = arith.addf %140, %158 : vector<8x32xf32>
    %c0_66 = arith.constant 0 : index
    %c0_67 = arith.constant 0 : index
    %160 = vector.load %arg15[%c0_66, %c0_67] : memref<1x32xf32, #tpu.memory_space<vmem>>, vector<1x32xf32>
    %161 = vector.shape_cast %160 : vector<1x32xf32> to vector<32xf32>
    %c0_68 = arith.constant 0 : index
    %c0_69 = arith.constant 0 : index
    %162 = vector.load %arg16[%c0_68, %c0_69] : memref<1x32xf32, #tpu.memory_space<vmem>>, vector<1x32xf32>
    %163 = vector.shape_cast %162 : vector<1x32xf32> to vector<32xf32>
    %cst_70 = arith.constant dense<0.000000e+00> : vector<8xf32>
    %164 = vector.multi_reduction <add>, %159, %cst_70 [1] : vector<8x32xf32> to vector<8xf32>
    %165 = vector.shape_cast %164 : vector<8xf32> to vector<8x1xf32>
    %cst_71 = arith.constant 3.200000e+01 : f32
    %166 = vector.broadcast %cst_71 : f32 to vector<8x1xf32>
    %167 = arith.divf %165, %166 : vector<8x1xf32>
    %168 = vector.broadcast %167 : vector<8x1xf32> to vector<8x32xf32>
    %169 = arith.subf %159, %168 : vector<8x32xf32>
    %170 = arith.mulf %169, %169 : vector<8x32xf32>
    %cst_72 = arith.constant dense<0.000000e+00> : vector<8xf32>
    %171 = vector.multi_reduction <add>, %170, %cst_72 [1] : vector<8x32xf32> to vector<8xf32>
    %172 = vector.shape_cast %171 : vector<8xf32> to vector<8x1xf32>
    %cst_73 = arith.constant 3.200000e+01 : f32
    %173 = vector.broadcast %cst_73 : f32 to vector<8x1xf32>
    %174 = arith.divf %172, %173 : vector<8x1xf32>
    %175 = vector.broadcast %167 : vector<8x1xf32> to vector<8x32xf32>
    %176 = arith.subf %159, %175 : vector<8x32xf32>
    %cst_74 = arith.constant 9.99999974E-6 : f32
    %177 = vector.broadcast %cst_74 : f32 to vector<8x1xf32>
    %178 = arith.addf %174, %177 : vector<8x1xf32>
    %179 = math.rsqrt %178 : vector<8x1xf32>
    %180 = vector.broadcast %179 : vector<8x1xf32> to vector<8x32xf32>
    %181 = arith.mulf %176, %180 : vector<8x32xf32>
    %182 = vector.shape_cast %161 : vector<32xf32> to vector<1x32xf32>
    %183 = vector.broadcast %182 : vector<1x32xf32> to vector<8x32xf32>
    %184 = arith.mulf %181, %183 : vector<8x32xf32>
    %185 = vector.shape_cast %163 : vector<32xf32> to vector<1x32xf32>
    %186 = vector.broadcast %185 : vector<1x32xf32> to vector<8x32xf32>
    %187 = arith.addf %184, %186 : vector<8x32xf32>
    %c0_75 = arith.constant 0 : index
    %c0_76 = arith.constant 0 : index
    %c0_77 = arith.constant 0 : index
    %188 = vector.load %arg17[%c0_75, %c0_76, %c0_77] : memref<1x8x32xf32, #tpu.memory_space<vmem>>, vector<1x8x32xf32>
    %189 = vector.shape_cast %188 : vector<1x8x32xf32> to vector<8x32xf32>
    %190 = vector.shape_cast %187 : vector<8x32xf32> to vector<1x8x32xf32>
    tpu.vector_store %arg17[%c0_75, %c0_76, %c0_77], %190 {strides = array<i32>} : memref<1x8x32xf32, #tpu.memory_space<vmem>>, vector<1x8x32xf32>,
    return
  }
  func.func @transform_0(%arg0: i32, %arg1: i32) -> (i32, i32, i32) {
    %c0_i32 = arith.constant 0 : i32
    %c0_i32_0 = arith.constant 0 : i32
    return %arg0, %arg1, %c0_i32 : i32, i32, i32
  }
  func.func @transform_1(%arg0: i32, %arg1: i32) -> (i32, i32, i32) {
    %c0_i32 = arith.constant 0 : i32
    %c0_i32_0 = arith.constant 0 : i32
    %c0_i32_1 = arith.constant 0 : i32
    return %arg0, %c0_i32, %c0_i32_0 : i32, i32, i32
  }
  func.func @transform_2(%arg0: i32, %arg1: i32) -> (i32, i32) {
    %c0_i32 = arith.constant 0 : i32
    %c0_i32_0 = arith.constant 0 : i32
    %c0_i32_1 = arith.constant 0 : i32
    return %c0_i32, %c0_i32_0 : i32, i32
  }
  func.func @transform_3(%arg0: i32, %arg1: i32) -> (i32, i32) {
    %c0_i32 = arith.constant 0 : i32
    %c0_i32_0 = arith.constant 0 : i32
    %c0_i32_1 = arith.constant 0 : i32
    return %c0_i32, %c0_i32_0 : i32, i32
  }
  func.func @transform_4(%arg0: i32, %arg1: i32) -> (i32, i32) {
    %c0_i32 = arith.constant 0 : i32
    %c0_i32_0 = arith.constant 0 : i32
    %c0_i32_1 = arith.constant 0 : i32
    return %c0_i32, %c0_i32_0 : i32, i32
  }
  func.func @transform_5(%arg0: i32, %arg1: i32) -> (i32, i32) {
    %c0_i32 = arith.constant 0 : i32
    %c0_i32_0 = arith.constant 0 : i32
    %c0_i32_1 = arith.constant 0 : i32
    return %c0_i32, %c0_i32_0 : i32, i32
  }
  func.func @transform_6(%arg0: i32, %arg1: i32) -> (i32, i32) {
    %c0_i32 = arith.constant 0 : i32
    %c0_i32_0 = arith.constant 0 : i32
    %c0_i32_1 = arith.constant 0 : i32
    return %c0_i32, %c0_i32_0 : i32, i32
  }
  func.func @transform_7(%arg0: i32, %arg1: i32) -> (i32, i32) {
    %c0_i32 = arith.constant 0 : i32
    %c0_i32_0 = arith.constant 0 : i32
    %c0_i32_1 = arith.constant 0 : i32
    return %c0_i32, %c0_i32_0 : i32, i32
  }
  func.func @transform_8(%arg0: i32, %arg1: i32) -> (i32, i32) {
    %c0_i32 = arith.constant 0 : i32
    %c0_i32_0 = arith.constant 0 : i32
    %c0_i32_1 = arith.constant 0 : i32
    return %c0_i32, %c0_i32_0 : i32, i32
  }
  func.func @transform_9(%arg0: i32, %arg1: i32) -> (i32, i32) {
    %c0_i32 = arith.constant 0 : i32
    %c0_i32_0 = arith.constant 0 : i32
    %c0_i32_1 = arith.constant 0 : i32
    return %c0_i32, %c0_i32_0 : i32, i32
  }
  func.func @transform_10(%arg0: i32, %arg1: i32) -> (i32, i32) {
    %c0_i32 = arith.constant 0 : i32
    %c0_i32_0 = arith.constant 0 : i32
    %c0_i32_1 = arith.constant 0 : i32
    return %c0_i32, %c0_i32_0 : i32, i32
  }
  func.func @transform_11(%arg0: i32, %arg1: i32) -> (i32, i32) {
    %c0_i32 = arith.constant 0 : i32
    %c0_i32_0 = arith.constant 0 : i32
    %c0_i32_1 = arith.constant 0 : i32
    return %c0_i32, %c0_i32_0 : i32, i32
  }
  func.func @transform_12(%arg0: i32, %arg1: i32) -> (i32, i32) {
    %c0_i32 = arith.constant 0 : i32
    %c0_i32_0 = arith.constant 0 : i32
    %c0_i32_1 = arith.constant 0 : i32
    return %c0_i32, %c0_i32_0 : i32, i32
  }
  func.func @transform_13(%arg0: i32, %arg1: i32) -> (i32, i32) {
    %c0_i32 = arith.constant 0 : i32
    %c0_i32_0 = arith.constant 0 : i32
    %c0_i32_1 = arith.constant 0 : i32
    return %c0_i32, %c0_i32_0 : i32, i32
  }
  func.func @transform_14(%arg0: i32, %arg1: i32) -> (i32, i32) {
    %c0_i32 = arith.constant 0 : i32
    %c0_i32_0 = arith.constant 0 : i32
    %c0_i32_1 = arith.constant 0 : i32
    return %c0_i32, %c0_i32_0 : i32, i32
  }
  func.func @transform_15(%arg0: i32, %arg1: i32) -> (i32, i32, i32) {
    %c0_i32 = arith.constant 0 : i32
    %c0_i32_0 = arith.constant 0 : i32
    return %arg0, %arg1, %c0_i32 : i32, i32, i32
  }
}

</mosaic_0001>

<llo_original>
// kernel: tpu_custom_call.1
$region0: #{tpu_custom_call.1}
  #allocation0 [shape = 'u32[]', space=smem, size = 0x4, offset = 0x4, fixed_abs, tag = 'smem constant byte address 0x4 - core index']
  #allocation1 [shape = 'u32[72,128]{1,0:T(1,128)}', space=vmem, size = 0x9000, scoped, tag = 'internal scratch']
  #allocation2 [shape = 'f32[8,32]{1,0:T(8,128)}', space=vmem, size = 0x1000, scoped, tag = 'scratch operand']
  %s0 = inlined_call_operand.vmem [shape: f32[2,8,32], index: 0, kind: input, shape index: {}]
  %s1 = inlined_call_operand.vmem [shape: f32[2,8,32], index: 1, kind: input, shape index: {}]
  %s2 = inlined_call_operand.vmem [shape: bf16[32,32], index: 2, kind: input, shape index: {}]
  %s3 = inlined_call_operand.vmem [shape: bf16[32,32], index: 3, kind: input, shape index: {}]
  %s4 = inlined_call_operand.vmem [shape: bf16[32,32], index: 4, kind: input, shape index: {}]
  %s5 = inlined_call_operand.hbm [shape: bf16[32,32], index: 5, kind: input, shape index: {}]
  %s6 = inlined_call_operand.vmem [shape: f32[1,32], index: 6, kind: input, shape index: {}]
  %s7 = inlined_call_operand.hbm [shape: bf16[32,128], index: 7, kind: input, shape index: {}]
  %s8 = inlined_call_operand.vmem [shape: f32[1,128], index: 8, kind: input, shape index: {}]
  %s9 = inlined_call_operand.vmem [shape: bf16[128,32], index: 9, kind: input, shape index: {}]
  %s10 = inlined_call_operand.vmem [shape: f32[1,32], index: 10, kind: input, shape index: {}]
  %s11 = inlined_call_operand.vmem [shape: f32[1,32], index: 11, kind: input, shape index: {}]
  %s12 = inlined_call_operand.vmem [shape: f32[1,32], index: 12, kind: input, shape index: {}]
  %s13 = inlined_call_operand.vmem [shape: f32[1,32], index: 13, kind: input, shape index: {}]
  %s14 = inlined_call_operand.vmem [shape: f32[1,32], index: 14, kind: input, shape index: {}]
  %s15 = inlined_call_operand.hbm [shape: f32[2,8,32], index: 15, kind: output, shape index: {}]
  %s16 = sld [smem:[#allocation0]]
  $region101: #{tpu_custom_call.1} parent=0
    _
  %s18 = ssub.s32 1, %s16
  %s19 = scalar_select 0, %s18, %s16
  $region1: #{tpu_custom_call.1} parent=0
    #allocation3 [shape = 'u8[8192]{0}', space=vmem, size = 0x2000, scoped, tag = 'input window, operand 5, single buffered']
    #allocation4 [shape = 's32[2]{0}', space=sflag, size = 0x8, scoped, tag = 'scoped memory for tpu_custom_call.1']
    #allocation5 [shape = 's32[2]{0}', space=sflag, size = 0x8, scoped, tag = 'scoped memory for tpu_custom_call.1']
    #allocation6 [shape = 'u8[8192]{0}', space=vmem, size = 0x2000, scoped, tag = 'input window, operand 7, single buffered']
    #allocation7 [shape = 's32[1]{0}', space=sflag, size = 0x4, scoped, tag = 'scoped memory for tpu_custom_call.1']
    #allocation8 [shape = 'u8[8192]{0}', space=vmem, size = 0x2000, scoped, tag = 'output window, operand 0']
    %20 = vsyncpa [#allocation4], 0
    %21 = vsyncpa [#allocation7], 0
    %22 = vsyncpa [#allocation5], 0
    %s23 = scalar_lea.sflag [#allocation5], 1
    %24 = vsyncpa %s23, 0
    loop: start=0, step=1, limit=4
    $region2: #{tpu_custom_call.1} parent=1 // loop_pre_header
      _
    $region3: #{tpu_custom_call.1} parent=1 // loop_header
      %s26 = sphi 0, %s30
      %p27 = scmp.ge.s32.totalorder %s26, 4
      %s33 = sphi 0, %s45
      %s34 = sphi 0, %s41
      %s35 = sphi 0, %s33
      %s36 = sphi 0, %s34
      %s37 = sphi 0, %s35
      %s38 = sphi 0, %s36
      %s50 = sphi 0, %s52
      %s53 = sphi 0, %s50
      %s54 = sphi 0, %s53
      %s70 = sphi 0, %s54
      %s76 = sphi 0, %s78
      %s79 = sphi 0, %s76
      %s80 = sphi 0, %s79
      %s96 = sphi 0, %s80
      %s100 = sphi 0, %s100
      %s102 = sphi 0, %s100
      %s103 = sphi 0, %s102
      %s117 = sphi 0, %s103
      %s121 = sphi 0, %s121
      %s123 = sphi 0, %s121
      %s124 = sphi 0, %s123
      %s138 = sphi 0, %s124
      %s142 = sphi 0, %s142
      %s144 = sphi 0, %s142
      %s145 = sphi 0, %s144
      %s159 = sphi 0, %s145
      %s163 = sphi 0, %s163
      %s165 = sphi 0, %s163
      %s166 = sphi 0, %s165
      %s180 = sphi 0, %s166
      %s184 = sphi 0, %s184
      %s186 = sphi 0, %s184
      %s187 = sphi 0, %s186
      %s201 = sphi 0, %s187
      %s205 = sphi 0, %s205
      %s207 = sphi 0, %s205
      %s208 = sphi 0, %s207
      %s222 = sphi 0, %s208
      %s226 = sphi 0, %s226
      %s228 = sphi 0, %s226
      %s229 = sphi 0, %s228
      %s243 = sphi 0, %s229
      %s247 = sphi 0, %s247
      %s249 = sphi 0, %s247
      %s250 = sphi 0, %s249
      %s264 = sphi 0, %s250
      %s268 = sphi 0, %s268
      %s270 = sphi 0, %s268
      %s271 = sphi 0, %s270
      %s285 = sphi 0, %s271
      %s289 = sphi 0, %s289
      %s291 = sphi 0, %s289
      %s292 = sphi 0, %s291
      %s306 = sphi 0, %s292
      %s310 = sphi 0, %s310
      %s312 = sphi 0, %s310
      %s313 = sphi 0, %s312
      %s327 = sphi 0, %s313
      %s331 = sphi 0, %s331
      %s333 = sphi 0, %s331
      %s334 = sphi 0, %s333
      %s348 = sphi 0, %s334
      %s352 = sphi 0, %s352
      %s354 = sphi 0, %s352
      %s355 = sphi 0, %s354
      %s369 = sphi 0, %s355
      %s377 = sphi 0, %s379
      %s380 = sphi 0, %s377
      %s381 = sphi 0, %s380
      %s397 = sphi 0, %s381
    $region4: #{tpu_custom_call.1} parent=1 // loop_header_branch
      %29 = sbr.rel (%p27) target = $region8
    $region5: #{tpu_custom_call.1} parent=1 // loop_body
      %s31 = ssub.s32 %s26, 1
      %s32 = ssub.s32 %s26, 2
      %s39 = sadd.s32 1, %s34
      %p40 = scmp.ge.s32.totalorder %s39, 1
      %s41 = scalar_select %p40, 0, %s39
      %s42 = sadd.s32 1, %s33
      %s43 = scalar_select %p40, %s42, %s33
      %p44 = scmp.ge.s32.totalorder %s43, 2
      %s45 = scalar_select %p44, 0, %s43
      %s46 = ssub.s32 %s33, %s45
      %s47 = ssub.s32 %s34, %s41
      %s48 = sor.u32 %s46, %s47
      %p49 = scmp.eq.s32.totalorder %s48, 0
      %s51 = sadd.s32 %s50, 1
      %s52 = scalar_select %p49, %s50, %s51
      %p55 = pneg %p49
      %p56 = scmp.eq.s32.totalorder %s26, 1
      %p57 = por %p55, %p56
      %p58 = scmp.ne.s32.totalorder %s50, %s53
      %p59 = scmp.eq.s32.totalorder %s26, 0
      %p60 = por %p58, %p59
      %p61 = scmp.ne.s32.totalorder %s50, %s53
      %p62 = scmp.eq.s32.totalorder %s31, 1
      %p63 = por %p61, %p62
      %p64 = scmp.ne.s32.totalorder %s53, %s54
      %p65 = scmp.eq.s32.totalorder %s31, 0
      %p66 = por %p64, %p65
      %p67 = scmp.ne.s32.totalorder %s53, %s54
      %p68 = scmp.eq.s32.totalorder %s32, 1
      %p69 = por %p67, %p68
      %p71 = scmp.ne.s32.totalorder %s54, %s70
      %p72 = scmp.eq.s32.totalorder %s32, 0
      %p73 = por %p71, %p72
      %s74 = ssub.s32 %s33, %s45
      %p75 = scmp.eq.s32.totalorder %s74, 0
      %s77 = sadd.s32 %s76, 1
      %s78 = scalar_select %p75, %s76, %s77
      %p81 = pneg %p75
      %p82 = scmp.eq.s32.totalorder %s26, 1
      %p83 = por %p81, %p82
      %p84 = scmp.ne.s32.totalorder %s76, %s79
      %p85 = scmp.eq.s32.totalorder %s26, 0
      %p86 = por %p84, %p85
      %p87 = scmp.ne.s32.totalorder %s76, %s79
      %p88 = scmp.eq.s32.totalorder %s31, 1
      %p89 = por %p87, %p88
      %p90 = scmp.ne.s32.totalorder %s79, %s80
      %p91 = scmp.eq.s32.totalorder %s31, 0
      %p92 = por %p90, %p91
      %p93 = scmp.ne.s32.totalorder %s79, %s80
      %p94 = scmp.eq.s32.totalorder %s32, 1
      %p95 = por %p93, %p94
      %p97 = scmp.ne.s32.totalorder %s80, %s96
      %p98 = scmp.eq.s32.totalorder %s32, 0
      %p99 = por %p97, %p98
      %s101 = sadd.s32 %s100, 1
      %p104 = scmp.eq.s32.totalorder %s26, 1
      %p105 = scmp.ne.s32.totalorder %s100, %s102
      %p106 = scmp.eq.s32.totalorder %s26, 0
      %p107 = por %p105, %p106
      %p108 = scmp.ne.s32.totalorder %s100, %s102
      %p109 = scmp.eq.s32.totalorder %s31, 1
      %p110 = por %p108, %p109
      %p111 = scmp.ne.s32.totalorder %s102, %s103
      %p112 = scmp.eq.s32.totalorder %s31, 0
      %p113 = por %p111, %p112
      %p114 = scmp.ne.s32.totalorder %s102, %s103
      %p115 = scmp.eq.s32.totalorder %s32, 1
      %p116 = por %p114, %p115
      %p118 = scmp.ne.s32.totalorder %s103, %s117
      %p119 = scmp.eq.s32.totalorder %s32, 0
      %p120 = por %p118, %p119
      %s122 = sadd.s32 %s121, 1
      %p125 = scmp.eq.s32.totalorder %s26, 1
      %p126 = scmp.ne.s32.totalorder %s121, %s123
      %p127 = scmp.eq.s32.totalorder %s26, 0
      %p128 = por %p126, %p127
      %p129 = scmp.ne.s32.totalorder %s121, %s123
      %p130 = scmp.eq.s32.totalorder %s31, 1
      %p131 = por %p129, %p130
      %p132 = scmp.ne.s32.totalorder %s123, %s124
      %p133 = scmp.eq.s32.totalorder %s31, 0
      %p134 = por %p132, %p133
      %p135 = scmp.ne.s32.totalorder %s123, %s124
      %p136 = scmp.eq.s32.totalorder %s32, 1
      %p137 = por %p135, %p136
      %p139 = scmp.ne.s32.totalorder %s124, %s138
      %p140 = scmp.eq.s32.totalorder %s32, 0
      %p141 = por %p139, %p140
      %s143 = sadd.s32 %s142, 1
      %p146 = scmp.eq.s32.totalorder %s26, 1
      %p147 = scmp.ne.s32.totalorder %s142, %s144
      %p148 = scmp.eq.s32.totalorder %s26, 0
      %p149 = por %p147, %p148
      %p150 = scmp.ne.s32.totalorder %s142, %s144
      %p151 = scmp.eq.s32.totalorder %s31, 1
      %p152 = por %p150, %p151
      %p153 = scmp.ne.s32.totalorder %s144, %s145
      %p154 = scmp.eq.s32.totalorder %s31, 0
      %p155 = por %p153, %p154
      %p156 = scmp.ne.s32.totalorder %s144, %s145
      %p157 = scmp.eq.s32.totalorder %s32, 1
      %p158 = por %p156, %p157
      %p160 = scmp.ne.s32.totalorder %s145, %s159
      %p161 = scmp.eq.s32.totalorder %s32, 0
      %p162 = por %p160, %p161
      %s164 = sadd.s32 %s163, 1
      %p167 = scmp.eq.s32.totalorder %s26, 1
      %p168 = scmp.ne.s32.totalorder %s163, %s165
      %p169 = scmp.eq.s32.totalorder %s26, 0
      %p170 = por %p168, %p169
      %p171 = scmp.ne.s32.totalorder %s163, %s165
      %p172 = scmp.eq.s32.totalorder %s31, 1
      %p173 = por %p171, %p172
      %p174 = scmp.ne.s32.totalorder %s165, %s166
      %p175 = scmp.eq.s32.totalorder %s31, 0
      %p176 = por %p174, %p175
      %p177 = scmp.ne.s32.totalorder %s165, %s166
      %p178 = scmp.eq.s32.totalorder %s32, 1
      %p179 = por %p177, %p178
      %p181 = scmp.ne.s32.totalorder %s166, %s180
      %p182 = scmp.eq.s32.totalorder %s32, 0
      %p183 = por %p181, %p182
      %s185 = sadd.s32 %s184, 1
      %p188 = scmp.eq.s32.totalorder %s26, 1
      %p189 = scmp.ne.s32.totalorder %s184, %s186
      %p190 = scmp.eq.s32.totalorder %s26, 0
      %p191 = por %p189, %p190
      %p192 = scmp.ne.s32.totalorder %s184, %s186
      %p193 = scmp.eq.s32.totalorder %s31, 1
      %p194 = por %p192, %p193
      %p195 = scmp.ne.s32.totalorder %s186, %s187
      %p196 = scmp.eq.s32.totalorder %s31, 0
      %p197 = por %p195, %p196
      %p198 = scmp.ne.s32.totalorder %s186, %s187
      %p199 = scmp.eq.s32.totalorder %s32, 1
      %p200 = por %p198, %p199
      %p202 = scmp.ne.s32.totalorder %s187, %s201
      %p203 = scmp.eq.s32.totalorder %s32, 0
      %p204 = por %p202, %p203
      %s206 = sadd.s32 %s205, 1
      %p209 = scmp.eq.s32.totalorder %s26, 1
      %p210 = scmp.ne.s32.totalorder %s205, %s207
      %p211 = scmp.eq.s32.totalorder %s26, 0
      %p212 = por %p210, %p211
      %p213 = scmp.ne.s32.totalorder %s205, %s207
      %p214 = scmp.eq.s32.totalorder %s31, 1
      %p215 = por %p213, %p214
      %p216 = scmp.ne.s32.totalorder %s207, %s208
      %p217 = scmp.eq.s32.totalorder %s31, 0
      %p218 = por %p216, %p217
      %p219 = scmp.ne.s32.totalorder %s207, %s208
      %p220 = scmp.eq.s32.totalorder %s32, 1
      %p221 = por %p219, %p220
      %p223 = scmp.ne.s32.totalorder %s208, %s222
      %p224 = scmp.eq.s32.totalorder %s32, 0
      %p225 = por %p223, %p224
      %s227 = sadd.s32 %s226, 1
      %p230 = scmp.eq.s32.totalorder %s26, 1
      %p231 = scmp.ne.s32.totalorder %s226, %s228
      %p232 = scmp.eq.s32.totalorder %s26, 0
      %p233 = por %p231, %p232
      %p234 = scmp.ne.s32.totalorder %s226, %s228
      %p235 = scmp.eq.s32.totalorder %s31, 1
      %p236 = por %p234, %p235
      %p237 = scmp.ne.s32.totalorder %s228, %s229
      %p238 = scmp.eq.s32.totalorder %s31, 0
      %p239 = por %p237, %p238
      %p240 = scmp.ne.s32.totalorder %s228, %s229
      %p241 = scmp.eq.s32.totalorder %s32, 1
      %p242 = por %p240, %p241
      %p244 = scmp.ne.s32.totalorder %s229, %s243
      %p245 = scmp.eq.s32.totalorder %s32, 0
      %p246 = por %p244, %p245
      %s248 = sadd.s32 %s247, 1
      %p251 = scmp.eq.s32.totalorder %s26, 1
      %p252 = scmp.ne.s32.totalorder %s247, %s249
      %p253 = scmp.eq.s32.totalorder %s26, 0
      %p254 = por %p252, %p253
      %p255 = scmp.ne.s32.totalorder %s247, %s249
      %p256 = scmp.eq.s32.totalorder %s31, 1
      %p257 = por %p255, %p256
      %p258 = scmp.ne.s32.totalorder %s249, %s250
      %p259 = scmp.eq.s32.totalorder %s31, 0
      %p260 = por %p258, %p259
      %p261 = scmp.ne.s32.totalorder %s249, %s250
      %p262 = scmp.eq.s32.totalorder %s32, 1
      %p263 = por %p261, %p262
      %p265 = scmp.ne.s32.totalorder %s250, %s264
      %p266 = scmp.eq.s32.totalorder %s32, 0
      %p267 = por %p265, %p266
      %s269 = sadd.s32 %s268, 1
      %p272 = scmp.eq.s32.totalorder %s26, 1
      %p273 = scmp.ne.s32.totalorder %s268, %s270
      %p274 = scmp.eq.s32.totalorder %s26, 0
      %p275 = por %p273, %p274
      %p276 = scmp.ne.s32.totalorder %s268, %s270
      %p277 = scmp.eq.s32.totalorder %s31, 1
      %p278 = por %p276, %p277
      %p279 = scmp.ne.s32.totalorder %s270, %s271
      %p280 = scmp.eq.s32.totalorder %s31, 0
      %p281 = por %p279, %p280
      %p282 = scmp.ne.s32.totalorder %s270, %s271
      %p283 = scmp.eq.s32.totalorder %s32, 1
      %p284 = por %p282, %p283
      %p286 = scmp.ne.s32.totalorder %s271, %s285
      %p287 = scmp.eq.s32.totalorder %s32, 0
      %p288 = por %p286, %p287
      %s290 = sadd.s32 %s289, 1
      %p293 = scmp.eq.s32.totalorder %s26, 1
      %p294 = scmp.ne.s32.totalorder %s289, %s291
      %p295 = scmp.eq.s32.totalorder %s26, 0
      %p296 = por %p294, %p295
      %p297 = scmp.ne.s32.totalorder %s289, %s291
      %p298 = scmp.eq.s32.totalorder %s31, 1
      %p299 = por %p297, %p298
      %p300 = scmp.ne.s32.totalorder %s291, %s292
      %p301 = scmp.eq.s32.totalorder %s31, 0
      %p302 = por %p300, %p301
      %p303 = scmp.ne.s32.totalorder %s291, %s292
      %p304 = scmp.eq.s32.totalorder %s32, 1
      %p305 = por %p303, %p304
      %p307 = scmp.ne.s32.totalorder %s292, %s306
      %p308 = scmp.eq.s32.totalorder %s32, 0
      %p309 = por %p307, %p308
      %s311 = sadd.s32 %s310, 1
      %p314 = scmp.eq.s32.totalorder %s26, 1
      %p315 = scmp.ne.s32.totalorder %s310, %s312
      %p316 = scmp.eq.s32.totalorder %s26, 0
      %p317 = por %p315, %p316
      %p318 = scmp.ne.s32.totalorder %s310, %s312
      %p319 = scmp.eq.s32.totalorder %s31, 1
      %p320 = por %p318, %p319
      %p321 = scmp.ne.s32.totalorder %s312, %s313
      %p322 = scmp.eq.s32.totalorder %s31, 0
      %p323 = por %p321, %p322
      %p324 = scmp.ne.s32.totalorder %s312, %s313
      %p325 = scmp.eq.s32.totalorder %s32, 1
      %p326 = por %p324, %p325
      %p328 = scmp.ne.s32.totalorder %s313, %s327
      %p329 = scmp.eq.s32.totalorder %s32, 0
      %p330 = por %p328, %p329
      %s332 = sadd.s32 %s331, 1
      %p335 = scmp.eq.s32.totalorder %s26, 1
      %p336 = scmp.ne.s32.totalorder %s331, %s333
      %p337 = scmp.eq.s32.totalorder %s26, 0
      %p338 = por %p336, %p337
      %p339 = scmp.ne.s32.totalorder %s331, %s333
      %p340 = scmp.eq.s32.totalorder %s31, 1
      %p341 = por %p339, %p340
      %p342 = scmp.ne.s32.totalorder %s333, %s334
      %p343 = scmp.eq.s32.totalorder %s31, 0
      %p344 = por %p342, %p343
      %p345 = scmp.ne.s32.totalorder %s333, %s334
      %p346 = scmp.eq.s32.totalorder %s32, 1
      %p347 = por %p345, %p346
      %p349 = scmp.ne.s32.totalorder %s334, %s348
      %p350 = scmp.eq.s32.totalorder %s32, 0
      %p351 = por %p349, %p350
      %s353 = sadd.s32 %s352, 1
      %p356 = scmp.eq.s32.totalorder %s26, 1
      %p357 = scmp.ne.s32.totalorder %s352, %s354
      %p358 = scmp.eq.s32.totalorder %s26, 0
      %p359 = por %p357, %p358
      %p360 = scmp.ne.s32.totalorder %s352, %s354
      %p361 = scmp.eq.s32.totalorder %s31, 1
      %p362 = por %p360, %p361
      %p363 = scmp.ne.s32.totalorder %s354, %s355
      %p364 = scmp.eq.s32.totalorder %s31, 0
      %p365 = por %p363, %p364
      %p366 = scmp.ne.s32.totalorder %s354, %s355
      %p367 = scmp.eq.s32.totalorder %s32, 1
      %p368 = por %p366, %p367
      %p370 = scmp.ne.s32.totalorder %s355, %s369
      %p371 = scmp.eq.s32.totalorder %s32, 0
      %p372 = por %p370, %p371
      %s373 = ssub.s32 %s33, %s45
      %s374 = ssub.s32 %s34, %s41
      %s375 = sor.u32 %s373, %s374
      %p376 = scmp.eq.s32.totalorder %s375, 0
      %s378 = sadd.s32 %s377, 1
      %s379 = scalar_select %p376, %s377, %s378
      %p382 = pneg %p376
      %p383 = scmp.eq.s32.totalorder %s26, 1
      %p384 = por %p382, %p383
      %p385 = scmp.ne.s32.totalorder %s377, %s380
      %p386 = scmp.eq.s32.totalorder %s26, 0
      %p387 = por %p385, %p386
      %p388 = scmp.ne.s32.totalorder %s377, %s380
      %p389 = scmp.eq.s32.totalorder %s31, 1
      %p390 = por %p388, %p389
      %p391 = scmp.ne.s32.totalorder %s380, %s381
      %p392 = scmp.eq.s32.totalorder %s31, 0
      %p393 = por %p391, %p392
      %p394 = scmp.ne.s32.totalorder %s380, %s381
      %p395 = scmp.eq.s32.totalorder %s32, 1
      %p396 = por %p394, %p395
      %p398 = scmp.ne.s32.totalorder %s381, %s397
      %p399 = scmp.eq.s32.totalorder %s32, 0
      %p400 = por %p398, %p399
      %p401 = scmp.le.s32.totalorder 1, %s26
      %p402 = scmp.lt.s32.totalorder %s26, 3
      %p403 = pnand %p401, %p402
      %p404 = pneg %p403
      // Predicated region
      $region9: #{tpu_custom_call.1} parent=5 // pred_check
        _
      $region10: #{tpu_custom_call.1} parent=5 // pred_check_branch
        %406 = sbr.rel (%p403) target = $region12
      $region11: #{tpu_custom_call.1} parent=5 // pred_region
        %s407 = ssub.s32 %s26, 1
        // Predicated region
        $region13: #{tpu_custom_call.1} parent=11 // pred_check
          %p408 = pneg %p113
        $region14: #{tpu_custom_call.1} parent=11 // pred_check_branch
          %410 = sbr.rel (%p408) target = $region16
        $region15: #{tpu_custom_call.1} parent=11 // pred_region
          _
        $region16: #{tpu_custom_call.1} parent=11 // pred_fallthru
          _
        // Predicated region
        $region17: #{tpu_custom_call.1} parent=11 // pred_check
          %p411 = pneg %p134
        $region18: #{tpu_custom_call.1} parent=11 // pred_check_branch
          %413 = sbr.rel (%p411) target = $region20
        $region19: #{tpu_custom_call.1} parent=11 // pred_region
          _
        $region20: #{tpu_custom_call.1} parent=11 // pred_fallthru
          _
        // Predicated region
        $region21: #{tpu_custom_call.1} parent=11 // pred_check
          %p414 = pneg %p155
        $region22: #{tpu_custom_call.1} parent=11 // pred_check_branch
          %416 = sbr.rel (%p414) target = $region24
        $region23: #{tpu_custom_call.1} parent=11 // pred_region
          _
        $region24: #{tpu_custom_call.1} parent=11 // pred_fallthru
          _
        // Predicated region
        $region25: #{tpu_custom_call.1} parent=11 // pred_check
          %p417 = pneg %p176
        $region26: #{tpu_custom_call.1} parent=11 // pred_check_branch
          %419 = sbr.rel (%p417) target = $region28
        $region27: #{tpu_custom_call.1} parent=11 // pred_region
          %421 = vsyncadd [#allocation4], 0
          %s422 = sshll.u32 %s5, 4
          %s423 = int_to_ptr.hbm [resolvable:$true] %s422
          %s424 = sshll.u32 [#allocation3], 4
          %s425 = int_to_ptr.vmem [resolvable:$true] %s424
          %430 = dma.hbm_to_vmem [thread:$0]  %s423, 256, %s425, [#allocation4], 64, 64, 4
        $region28: #{tpu_custom_call.1} parent=11 // pred_fallthru
          _
        // Predicated region
        $region29: #{tpu_custom_call.1} parent=11 // pred_check
          %p431 = pneg %p197
        $region30: #{tpu_custom_call.1} parent=11 // pred_check_branch
          %433 = sbr.rel (%p431) target = $region32
        $region31: #{tpu_custom_call.1} parent=11 // pred_region
          _
        $region32: #{tpu_custom_call.1} parent=11 // pred_fallthru
          _
        // Predicated region
        $region33: #{tpu_custom_call.1} parent=11 // pred_check
          %p434 = pneg %p218
        $region34: #{tpu_custom_call.1} parent=11 // pred_check_branch
          %436 = sbr.rel (%p434) target = $region36
        $region35: #{tpu_custom_call.1} parent=11 // pred_region
          %438 = vsyncadd [#allocation7], 0
          %s439 = sshll.u32 %s7, 4
          %s440 = int_to_ptr.hbm [resolvable:$true] %s439
          %s441 = sshll.u32 [#allocation6], 4
          %s442 = int_to_ptr.vmem [resolvable:$true] %s441
          %447 = dma.hbm_to_vmem [thread:$0]  %s440, 256, %s442, [#allocation7], 64, 64, 4
        $region36: #{tpu_custom_call.1} parent=11 // pred_fallthru
          _
        // Predicated region
        $region37: #{tpu_custom_call.1} parent=11 // pred_check
          %p448 = pneg %p239
        $region38: #{tpu_custom_call.1} parent=11 // pred_check_branch
          %450 = sbr.rel (%p448) target = $region40
        $region39: #{tpu_custom_call.1} parent=11 // pred_region
          _
        $region40: #{tpu_custom_call.1} parent=11 // pred_fallthru
          _
        // Predicated region
        $region41: #{tpu_custom_call.1} parent=11 // pred_check
          %p451 = pneg %p260
        $region42: #{tpu_custom_call.1} parent=11 // pred_check_branch
          %453 = sbr.rel (%p451) target = $region44
        $region43: #{tpu_custom_call.1} parent=11 // pred_region
          _
        $region44: #{tpu_custom_call.1} parent=11 // pred_fallthru
          _
        // Predicated region
        $region45: #{tpu_custom_call.1} parent=11 // pred_check
          %p454 = pneg %p281
        $region46: #{tpu_custom_call.1} parent=11 // pred_check_branch
          %456 = sbr.rel (%p454) target = $region48
        $region47: #{tpu_custom_call.1} parent=11 // pred_region
          _
        $region48: #{tpu_custom_call.1} parent=11 // pred_fallthru
          _
        // Predicated region
        $region49: #{tpu_custom_call.1} parent=11 // pred_check
          %p457 = pneg %p302
        $region50: #{tpu_custom_call.1} parent=11 // pred_check_branch
          %459 = sbr.rel (%p457) target = $region52
        $region51: #{tpu_custom_call.1} parent=11 // pred_region
          _
        $region52: #{tpu_custom_call.1} parent=11 // pred_fallthru
          _
        // Predicated region
        $region53: #{tpu_custom_call.1} parent=11 // pred_check
          %p460 = pneg %p323
        $region54: #{tpu_custom_call.1} parent=11 // pred_check_branch
          %462 = sbr.rel (%p460) target = $region56
        $region55: #{tpu_custom_call.1} parent=11 // pred_region
          _
        $region56: #{tpu_custom_call.1} parent=11 // pred_fallthru
          _
        // Predicated region
        $region57: #{tpu_custom_call.1} parent=11 // pred_check
          %p463 = pneg %p344
        $region58: #{tpu_custom_call.1} parent=11 // pred_check_branch
          %465 = sbr.rel (%p463) target = $region60
        $region59: #{tpu_custom_call.1} parent=11 // pred_region
          _
        $region60: #{tpu_custom_call.1} parent=11 // pred_fallthru
          _
        // Predicated region
        $region61: #{tpu_custom_call.1} parent=11 // pred_check
          %p466 = pneg %p365
        $region62: #{tpu_custom_call.1} parent=11 // pred_check_branch
          %468 = sbr.rel (%p466) target = $region64
        $region63: #{tpu_custom_call.1} parent=11 // pred_region
          _
        $region64: #{tpu_custom_call.1} parent=11 // pred_fallthru
          _
      $region12: #{tpu_custom_call.1} parent=5 // pred_fallthru
        _
      %p469 = scmp.lt.s32.totalorder %s26, 2
      // Predicated region
      $region65: #{tpu_custom_call.1} parent=5 // pred_check
        %p470 = pneg %p469
      $region66: #{tpu_custom_call.1} parent=5 // pred_check_branch
        %472 = sbr.rel (%p470) target = $region68
      $region67: #{tpu_custom_call.1} parent=5 // pred_region
        // Predicated region
        $region69: #{tpu_custom_call.1} parent=67 // pred_check
          %p473 = pneg %p60
        $region70: #{tpu_custom_call.1} parent=67 // pred_check_branch
          %475 = sbr.rel (%p473) target = $region72
        $region71: #{tpu_custom_call.1} parent=67 // pred_region
          %p476 = scmp.lt.s32.totalorder %s33, 1
          %s477 = scalar_select %p476, %s33, 1
          %p478 = scmp.lt.s32.totalorder %s34, 0
          %s479 = scalar_select %p478, %s34, 0
          %s480 = sadd.s32 %s479, %s477
          %s481 = smul.addr %s480, 8
          %s482 = scalar_lea.vmem %s0, %s481
        $region72: #{tpu_custom_call.1} parent=67 // pred_fallthru
          _
        // Predicated region
        $region73: #{tpu_custom_call.1} parent=67 // pred_check
          %p483 = pneg %p86
        $region74: #{tpu_custom_call.1} parent=67 // pred_check_branch
          %485 = sbr.rel (%p483) target = $region76
        $region75: #{tpu_custom_call.1} parent=67 // pred_region
          %p486 = scmp.lt.s32.totalorder %s33, 1
          %s487 = scalar_select %p486, %s33, 1
          %s488 = smul.addr %s487, 8
          %s489 = scalar_lea.vmem %s1, %s488
        $region76: #{tpu_custom_call.1} parent=67 // pred_fallthru
          _
      $region68: #{tpu_custom_call.1} parent=5 // pred_fallthru
        _
      %p490 = scmp.le.s32.totalorder 1, %s26
      %p491 = scmp.lt.s32.totalorder %s26, 3
      %p492 = pnand %p490, %p491
      %p493 = pneg %p492
      // Predicated region
      $region77: #{tpu_custom_call.1} parent=5 // pred_check
        _
      $region78: #{tpu_custom_call.1} parent=5 // pred_check_branch
        %495 = sbr.rel (%p492) target = $region80
      $region79: #{tpu_custom_call.1} parent=5 // pred_region
        %s496 = ssub.s32 %s26, 1
        // Predicated region
        $region81: #{tpu_custom_call.1} parent=79 // pred_check
          %p497 = pneg %p176
        $region82: #{tpu_custom_call.1} parent=79 // pred_check_branch
          %499 = sbr.rel (%p497) target = $region84
        $region83: #{tpu_custom_call.1} parent=79 // pred_region
          %501 = dma.done [#allocation4], 256
        $region84: #{tpu_custom_call.1} parent=79 // pred_fallthru
          _
        // Predicated region
        $region85: #{tpu_custom_call.1} parent=79 // pred_check
          %p502 = pneg %p218
        $region86: #{tpu_custom_call.1} parent=79 // pred_check_branch
          %504 = sbr.rel (%p502) target = $region88
        $region87: #{tpu_custom_call.1} parent=79 // pred_region
          %506 = dma.done [#allocation7], 256
        $region88: #{tpu_custom_call.1} parent=79 // pred_fallthru
          _
        %p507 = scmp.lt.s32.totalorder %s35, 1
        %s508 = scalar_select %p507, %s35, 1
        %p509 = scmp.lt.s32.totalorder %s36, 0
        %s510 = scalar_select %p509, %s36, 0
        %s511 = sadd.s32 %s510, %s508
        %s512 = smul.addr %s511, 8
        %s513 = scalar_lea.vmem %s0, %s512
        %p514 = pneg %p66
        %p515 = pneg %p63
        %p516 = scmp.lt.s32.totalorder %s35, 1
        %s517 = scalar_select %p516, %s35, 1
        %s518 = smul.addr %s517, 8
        %s519 = scalar_lea.vmem %s1, %s518
        %p520 = pneg %p92
        %p521 = pneg %p89
        %p522 = pneg %p113
        %p523 = pneg %p110
        %p524 = pneg %p134
        %p525 = pneg %p131
        %p526 = pneg %p155
        %p527 = pneg %p152
        %p528 = pneg %p176
        %p529 = pneg %p173
        %p530 = pneg %p197
        %p531 = pneg %p194
        %p532 = pneg %p218
        %p533 = pneg %p215
        %p534 = pneg %p239
        %p535 = pneg %p236
        %p536 = pneg %p260
        %p537 = pneg %p257
        %p538 = pneg %p281
        %p539 = pneg %p278
        %p540 = pneg %p302
        %p541 = pneg %p299
        %p542 = pneg %p323
        %p543 = pneg %p320
        %p544 = pneg %p344
        %p545 = pneg %p341
        %p546 = pneg %p365
        %p547 = pneg %p362
        %p548 = pneg %p393
        %p549 = pneg %p390
        %s550 = sand.u32 %s380, 1
        %s551 = scalar_lea.sflag [#allocation5], %s550
        %s552 = sand.u32 %s380, 1
        %s553 = smul.addr %s552, 8
        %s554 = scalar_lea.vmem [#allocation8], %s553
        %p555 = scmp.lt.s32.totalorder %s35, 1
        %s556 = scalar_select %p555, %s35, 1
        %p557 = scmp.lt.s32.totalorder %s36, 0
        %s558 = scalar_select %p557, %s36, 0
        %s559 = sadd.s32 %s558, %s556
        %s560 = smul.addr %s559, 8
        %s561 = scalar_lea.vmem %s0, %s560
        %p562 = scmp.lt.s32.totalorder %s35, 1
        %s563 = scalar_select %p562, %s35, 1
        %s564 = smul.addr %s563, 8
        %s565 = scalar_lea.vmem %s1, %s564
        %v567 = vld [vmem:[%s561] sm:$0xff]
        %v568 = vld [vmem:[%s565] sm:$0xff]
        %v569 = vpack.c.bf16 %v567, %v567
        %v570 = vpack.c.bf16 %v568, %v568
        %v571 = vld [vmem:[%s2] sm:$0xf]
        %v572 = vld [vmem:[%s2 + $0x4] sm:$0xf]
        %v573 = vld [vmem:[%s2 + $0x8] sm:$0xf]
        %v574 = vld [vmem:[%s2 + $0xc] sm:$0xf]
        %v579 = vunpack.c.l.b16 %v571
        %v580 = vunpack.c.l.b16 %v572
        %v581 = vunpack.c.l.b16 %v573
        %v582 = vunpack.c.l.b16 %v574
        %v583 = vpack.c.b16 %v580, %v579
        %v584 = vpack.c.b16 %v582, %v581
        %vm587 = vcmask 261120
        %v589 = vsel %vm587, %v569, 0
        %591 = vmatpush.bf16.msra.mxu0 0
        %592 = vmatpush.bf16.msra.mxu0 0
        %593 = vmatpush.bf16.msra.mxu0 0
        %594 = vmatpush.bf16.msra.mxu0 0
        %595 = vmatpush.bf16.msra.mxu0 0
        %596 = vmatpush.bf16.msra.mxu0 0
        %597 = vmatpush.bf16.msra.mxu0 %v584
        %598 = vmatpush.bf16.msra.mxu0 %v583
        %599 = vmatmul.bf16.gmra.mxu0 %v589
        %v600 = vpop.f32.mrf.mxu0
        %v601 = vadd.f32 0.0, %v600
        %v602 = vpop.f32.mrf.mxu0
        %603 = vdwg.mxu0
        %v604 = vld [vmem:[%s3] sm:$0xf]
        %v605 = vld [vmem:[%s3 + $0x4] sm:$0xf]
        %v606 = vld [vmem:[%s3 + $0x8] sm:$0xf]
        %v607 = vld [vmem:[%s3 + $0xc] sm:$0xf]
        %v612 = vunpack.c.l.b16 %v604
        %v613 = vunpack.c.l.b16 %v605
        %v614 = vunpack.c.l.b16 %v606
        %v615 = vunpack.c.l.b16 %v607
        %v616 = vpack.c.b16 %v613, %v612
        %v617 = vpack.c.b16 %v615, %v614
        %v621 = vsel %vm587, %v570, 0
        %623 = vmatpush.bf16.msra.mxu0 0
        %624 = vmatpush.bf16.msra.mxu0 0
        %625 = vmatpush.bf16.msra.mxu0 0
        %626 = vmatpush.bf16.msra.mxu0 0
        %627 = vmatpush.bf16.msra.mxu0 0
        %628 = vmatpush.bf16.msra.mxu0 0
        %629 = vmatpush.bf16.msra.mxu0 %v617
        %630 = vmatpush.bf16.msra.mxu0 %v616
        %631 = vmatmul.bf16.gmra.mxu0 %v621
        %v632 = vpop.f32.mrf.mxu0
        %v633 = vadd.f32 0.0, %v632
        %v634 = vpop.f32.mrf.mxu0
        %635 = vdwg.mxu0
        %v636 = vld [vmem:[%s4] sm:$0xf]
        %v637 = vld [vmem:[%s4 + $0x4] sm:$0xf]
        %v638 = vld [vmem:[%s4 + $0x8] sm:$0xf]
        %v639 = vld [vmem:[%s4 + $0xc] sm:$0xf]
        %v644 = vunpack.c.l.b16 %v636
        %v645 = vunpack.c.l.b16 %v637
        %v646 = vunpack.c.l.b16 %v638
        %v647 = vunpack.c.l.b16 %v639
        %v648 = vpack.c.b16 %v645, %v644
        %v649 = vpack.c.b16 %v647, %v646
        %652 = vmatpush.bf16.msra.mxu0 0
        %653 = vmatpush.bf16.msra.mxu0 0
        %654 = vmatpush.bf16.msra.mxu0 0
        %655 = vmatpush.bf16.msra.mxu0 0
        %656 = vmatpush.bf16.msra.mxu0 0
        %657 = vmatpush.bf16.msra.mxu0 0
        %658 = vmatpush.bf16.msra.mxu0 %v649
        %659 = vmatpush.bf16.msra.mxu0 %v648
        %660 = vmatmul.bf16.gmra.mxu0 %v621
        %v661 = vpop.f32.mrf.mxu0
        %v662 = vadd.f32 0.0, %v661
        %v663 = vpop.f32.mrf.mxu0
        %664 = vdwg.mxu0
        %v665 = vmul.f32 %v601, 0.17677669
        %v666 = vpack.c.bf16 %v665, %v665
        %v667 = vpack.c.bf16 %v633, %v633
        %v668 = vpack.c.bf16 %v662, %v662
        %s669 = smul.u32 %s36, 8
        %v670 = vlaneseq
        %v671 = vshrl.u32 %v670, 7
        %v672 = vstv %s669
        %v673 = vadd.s32 %v672, %v671
        %v674 = vlaneseq
        %v675 = vand.u32 %v674, 127
        %vm676 = vcmp.ge.s32.totalorder %v673, %v675
        %vm677 = vcmask 64512
        %v679 = vsel %vm677, %v666, 0
        %v682 = vsel %vm677, %v667, 0
        %684 = vmatpush.bf16.xpose.msra.mxu0 0
        %685 = vmatpush.bf16.xpose.msra.mxu0 0
        %686 = vmatpush.bf16.xpose.msra.mxu0 0
        %687 = vmatpush.bf16.xpose.msra.mxu0 0
        %688 = vmatpush.bf16.xpose.msra.mxu0 0
        %689 = vmatpush.bf16.xpose.msra.mxu0 0
        %690 = vmatpush.bf16.xpose.msra.mxu0 0
        %691 = vmatpush.bf16.xpose.msra.mxu0 %v682
        %692 = vmatmul.bf16.gmra.mxu0 %v679
        %v693 = vpop.f32.mrf.mxu0
        %v694 = vadd.f32 0.0, %v693
        %v695 = vpop.f32.mrf.mxu0
        %696 = vdwg.mxu0
        %v697 = vsel %vm676, %v694, -1e+30
        %v698 = vsel %vm677, %v697, -inf
        %699 = vmax.xlane.f32.xlu0 %v698
        %v700 = vpop.xlane.xlu0 %699
        %v701 = vsub.f32 %v697, %v700
        %v702 = vmul.f32 %v701, 1.442695
        %v703 = vpow.pop %v702
        %v704 = vsel %vm677, %v703, 0.0
        %705 = vadd.xlane.f32.xlu0 %v704
        %v706 = vpop.xlane.xlu0 %705
        %v707 = vrcp.pop %v706
        %v708 = vmul.f32 %v703, %v707
        %v709 = vpack.c.bf16 %v708, %v708
        %v711 = vsel %vm677, %v709, 0
        %vm713 = vcmask 1043456
        %v715 = vsel %vm713, %v668, 0
        %717 = vmatpush.bf16.msra.mxu0 0
        %718 = vmatpush.bf16.msra.mxu0 0
        %719 = vmatpush.bf16.msra.mxu0 0
        %720 = vmatpush.bf16.msra.mxu0 0
        %721 = vmatpush.bf16.msra.mxu0 0
        %722 = vmatpush.bf16.msra.mxu0 0
        %723 = vmatpush.bf16.msra.mxu0 0
        %724 = vmatpush.bf16.msra.mxu0 %v715
        %725 = vmatmul.bf16.gmra.mxu0 %v711
        %v726 = vpop.f32.mrf.mxu0
        %v727 = vadd.f32 0.0, %v726
        %v728 = vpop.f32.mrf.mxu0
        %729 = vdwg.mxu0
        %730 = vst.msk [vmem:[#allocation2] sm:$0xff] %vm677, %v727
        %v732 = vunpack.c.l.b16 %v666
        %v733 = vpack.c.b16 %v732, %v732
        %734 = vrot.lane.b32.xlu0 %v733, 120
        %v735 = vpop.permute.xlu0 %734
        %v737 = vunpack.c.l.b16 %v667
        %v738 = vpack.c.b16 %v737, %v737
        %739 = vrot.lane.b32.xlu0 %v738, 120
        %v740 = vpop.permute.xlu0 %739
        %v742 = vsel %vm677, %v735, 0
        %v745 = vsel %vm677, %v740, 0
        %747 = vmatpush.bf16.xpose.msra.mxu0 0
        %748 = vmatpush.bf16.xpose.msra.mxu0 0
        %749 = vmatpush.bf16.xpose.msra.mxu0 0
        %750 = vmatpush.bf16.xpose.msra.mxu0 0
        %751 = vmatpush.bf16.xpose.msra.mxu0 0
        %752 = vmatpush.bf16.xpose.msra.mxu0 0
        %753 = vmatpush.bf16.xpose.msra.mxu0 0
        %754 = vmatpush.bf16.xpose.msra.mxu0 %v745
        %755 = vmatmul.bf16.gmra.mxu0 %v742
        %v756 = vpop.f32.mrf.mxu0
        %v757 = vadd.f32 0.0, %v756
        %v758 = vpop.f32.mrf.mxu0
        %759 = vdwg.mxu0
        %v760 = vsel %vm676, %v757, -1e+30
        %v761 = vsel %vm677, %v760, -inf
        %762 = vmax.xlane.f32.xlu0 %v761
        %v763 = vpop.xlane.xlu0 %762
        %v764 = vsub.f32 %v760, %v763
        %v765 = vmul.f32 %v764, 1.442695
        %v766 = vpow.pop %v765
        %v767 = vsel %vm677, %v766, 0.0
        %768 = vadd.xlane.f32.xlu0 %v767
        %v769 = vpop.xlane.xlu0 %768
        %v770 = vrcp.pop %v769
        %v771 = vmul.f32 %v766, %v770
        %v772 = vpack.c.bf16 %v771, %v771
        %v774 = vunpack.c.l.b16 %v668
        %v775 = vpack.c.b16 %v774, %v774
        %776 = vrot.lane.b32.xlu0 %v775, 120
        %v777 = vpop.permute.xlu0 %776
        %v779 = vsel %vm677, %v772, 0
        %v782 = vsel %vm713, %v777, 0
        %784 = vmatpush.bf16.msra.mxu0 0
        %785 = vmatpush.bf16.msra.mxu0 0
        %786 = vmatpush.bf16.msra.mxu0 0
        %787 = vmatpush.bf16.msra.mxu0 0
        %788 = vmatpush.bf16.msra.mxu0 0
        %789 = vmatpush.bf16.msra.mxu0 0
        %790 = vmatpush.bf16.msra.mxu0 0
        %791 = vmatpush.bf16.msra.mxu0 %v782
        %792 = vmatmul.bf16.gmra.mxu0 %v779
        %v793 = vpop.f32.mrf.mxu0
        %v794 = vadd.f32 0.0, %v793
        %v795 = vpop.f32.mrf.mxu0
        %796 = vdwg.mxu0
        %798 = vrot.lane.b32.xlu0 %v794, 8
        %v799 = vpop.permute.xlu0 %798
        %vm801 = vcmask 130112
        %802 = vst.msk [vmem:[#allocation2] sm:$0xff] %vm801, %v799
        %803 = vrot.lane.b32.xlu0 %v733, 112
        %v804 = vpop.permute.xlu0 %803
        %805 = vrot.lane.b32.xlu0 %v738, 112
        %v806 = vpop.permute.xlu0 %805
        %v808 = vsel %vm677, %v804, 0
        %v811 = vsel %vm677, %v806, 0
        %813 = vmatpush.bf16.xpose.msra.mxu0 0
        %814 = vmatpush.bf16.xpose.msra.mxu0 0
        %815 = vmatpush.bf16.xpose.msra.mxu0 0
        %816 = vmatpush.bf16.xpose.msra.mxu0 0
        %817 = vmatpush.bf16.xpose.msra.mxu0 0
        %818 = vmatpush.bf16.xpose.msra.mxu0 0
        %819 = vmatpush.bf16.xpose.msra.mxu0 0
        %820 = vmatpush.bf16.xpose.msra.mxu0 %v811
        %821 = vmatmul.bf16.gmra.mxu0 %v808
        %v822 = vpop.f32.mrf.mxu0
        %v823 = vadd.f32 0.0, %v822
        %v824 = vpop.f32.mrf.mxu0
        %825 = vdwg.mxu0
        %v826 = vsel %vm676, %v823, -1e+30
        %v827 = vsel %vm677, %v826, -inf
        %828 = vmax.xlane.f32.xlu0 %v827
        %v829 = vpop.xlane.xlu0 %828
        %v830 = vsub.f32 %v826, %v829
        %v831 = vmul.f32 %v830, 1.442695
        %v832 = vpow.pop %v831
        %v833 = vsel %vm677, %v832, 0.0
        %834 = vadd.xlane.f32.xlu0 %v833
        %v835 = vpop.xlane.xlu0 %834
        %v836 = vrcp.pop %v835
        %v837 = vmul.f32 %v832, %v836
        %v838 = vpack.c.bf16 %v837, %v837
        %839 = vrot.lane.b32.xlu0 %v775, 112
        %v840 = vpop.permute.xlu0 %839
        %v842 = vsel %vm677, %v838, 0
        %v845 = vsel %vm713, %v840, 0
        %847 = vmatpush.bf16.msra.mxu0 0
        %848 = vmatpush.bf16.msra.mxu0 0
        %849 = vmatpush.bf16.msra.mxu0 0
        %850 = vmatpush.bf16.msra.mxu0 0
        %851 = vmatpush.bf16.msra.mxu0 0
        %852 = vmatpush.bf16.msra.mxu0 0
        %853 = vmatpush.bf16.msra.mxu0 0
        %854 = vmatpush.bf16.msra.mxu0 %v845
        %855 = vmatmul.bf16.gmra.mxu0 %v842
        %v856 = vpop.f32.mrf.mxu0
        %v857 = vadd.f32 0.0, %v856
        %v858 = vpop.f32.mrf.mxu0
        %859 = vdwg.mxu0
        %861 = vrot.lane.b32.xlu0 %v857, 16
        %v862 = vpop.permute.xlu0 %861
        %vm864 = vcmask 195712
        %865 = vst.msk [vmem:[#allocation2] sm:$0xff] %vm864, %v862
        %866 = vrot.lane.b32.xlu0 %v733, 104
        %v867 = vpop.permute.xlu0 %866
        %868 = vrot.lane.b32.xlu0 %v738, 104
        %v869 = vpop.permute.xlu0 %868
        %v871 = vsel %vm677, %v867, 0
        %v874 = vsel %vm677, %v869, 0
        %876 = vmatpush.bf16.xpose.msra.mxu0 0
        %877 = vmatpush.bf16.xpose.msra.mxu0 0
        %878 = vmatpush.bf16.xpose.msra.mxu0 0
        %879 = vmatpush.bf16.xpose.msra.mxu0 0
        %880 = vmatpush.bf16.xpose.msra.mxu0 0
        %881 = vmatpush.bf16.xpose.msra.mxu0 0
        %882 = vmatpush.bf16.xpose.msra.mxu0 0
        %883 = vmatpush.bf16.xpose.msra.mxu0 %v874
        %884 = vmatmul.bf16.gmra.mxu0 %v871
        %v885 = vpop.f32.mrf.mxu0
        %v886 = vadd.f32 0.0, %v885
        %v887 = vpop.f32.mrf.mxu0
        %888 = vdwg.mxu0
        %v889 = vsel %vm676, %v886, -1e+30
        %v890 = vsel %vm677, %v889, -inf
        %891 = vmax.xlane.f32.xlu0 %v890
        %v892 = vpop.xlane.xlu0 %891
        %v893 = vsub.f32 %v889, %v892
        %v894 = vmul.f32 %v893, 1.442695
        %v895 = vpow.pop %v894
        %v896 = vsel %vm677, %v895, 0.0
        %897 = vadd.xlane.f32.xlu0 %v896
        %v898 = vpop.xlane.xlu0 %897
        %v899 = vrcp.pop %v898
        %v900 = vmul.f32 %v895, %v899
        %v901 = vpack.c.bf16 %v900, %v900
        %902 = vrot.lane.b32.xlu0 %v775, 104
        %v903 = vpop.permute.xlu0 %902
        %v905 = vsel %vm677, %v901, 0
        %v908 = vsel %vm713, %v903, 0
        %910 = vmatpush.bf16.msra.mxu0 0
        %911 = vmatpush.bf16.msra.mxu0 0
        %912 = vmatpush.bf16.msra.mxu0 0
        %913 = vmatpush.bf16.msra.mxu0 0
        %914 = vmatpush.bf16.msra.mxu0 0
        %915 = vmatpush.bf16.msra.mxu0 0
        %916 = vmatpush.bf16.msra.mxu0 0
        %917 = vmatpush.bf16.msra.mxu0 %v908
        %918 = vmatmul.bf16.gmra.mxu0 %v905
        %v919 = vpop.f32.mrf.mxu0
        %v920 = vadd.f32 0.0, %v919
        %v921 = vpop.f32.mrf.mxu0
        %922 = vdwg.mxu0
        %924 = vrot.lane.b32.xlu0 %v920, 24
        %v925 = vpop.permute.xlu0 %924
        %vm927 = vcmask 261312
        %928 = vst.msk [vmem:[#allocation2] sm:$0xff] %vm927, %v925
        %v929 = vld [vmem:[#allocation2] sm:$0xff]
        %v930 = vpack.c.bf16 %v929, %v929
        %v931 = vld [vmem:[#allocation3] sm:$0xf]
        %v932 = vld [vmem:[#allocation3 + $0x4] sm:$0xf]
        %v933 = vld [vmem:[#allocation3 + $0x8] sm:$0xf]
        %v934 = vld [vmem:[#allocation3 + $0xc] sm:$0xf]
        %v935 = vld [vmem:[%s6] sm:$0x1]
        %v937 = vperm.slane %v935, 0
        %v943 = vunpack.c.l.b16 %v931
        %v944 = vunpack.c.l.b16 %v932
        %v945 = vunpack.c.l.b16 %v933
        %v946 = vunpack.c.l.b16 %v934
        %v947 = vpack.c.b16 %v944, %v943
        %v948 = vpack.c.b16 %v946, %v945
        %v952 = vsel %vm587, %v930, 0
        %954 = vmatpush.bf16.msra.mxu0 0
        %955 = vmatpush.bf16.msra.mxu0 0
        %956 = vmatpush.bf16.msra.mxu0 0
        %957 = vmatpush.bf16.msra.mxu0 0
        %958 = vmatpush.bf16.msra.mxu0 0
        %959 = vmatpush.bf16.msra.mxu0 0
        %960 = vmatpush.bf16.msra.mxu0 %v948
        %961 = vmatpush.bf16.msra.mxu0 %v947
        %962 = vmatmul.bf16.gmra.mxu0 %v952
        %v963 = vpop.f32.mrf.mxu0
        %v964 = vadd.f32 %v937, %v963
        %v965 = vpop.f32.mrf.mxu0
        %966 = vdwg.mxu0
        %v967 = vadd.f32 %v567, %v964
        %v968 = vld [vmem:[%s11] sm:$0x1]
        %v969 = vld [vmem:[%s12] sm:$0x1]
        %v970 = vsel %vm587, %v967, 0.0
        %971 = vadd.xlane.f32.xlu0 %v970
        %v972 = vpop.xlane.xlu0 %971
        %v973 = vrcp.pop 32.0
        %v974 = vmul.f32 32.0, %v973
        %v975 = vsub.f32 1.0, %v974
        %v976 = vmul.f32 %v973, %v975
        %v977 = vadd.f32 %v973, %v976
        %vm978 = vweird.f32 %v973
        %v979 = vsel %vm978, %v973, %v977
        %v980 = vmul.f32 %v972, %v979
        %v981 = vsub.f32 %v967, %v980
        %v982 = vmul.f32 %v981, %v981
        %v983 = vsel %vm587, %v982, 0.0
        %984 = vadd.xlane.f32.xlu0 %v983
        %v985 = vpop.xlane.xlu0 %984
        %v986 = vmul.f32 %v985, %v979
        %v987 = vadd.f32 %v986, 1e-05
        %v988 = vrsqrt.pop %v987
        %v989 = vmul.f32 %v988, %v987
        %v990 = vmul.f32 %v989, %v988
        %v991 = vmul.f32 0.5, %v990
        %v992 = vsub.f32 1.5, %v991
        %v993 = vmul.f32 %v988, %v992
        %vm994 = vweird.f32 %v987
        %vm995 = vweird.f32 %v988
        %vm996 = vmor %vm994, %vm995
        %v997 = vsel %vm996, %v988, %v993
        %v998 = vmul.f32 %v981, %v997
        %v1000 = vperm.slane %v968, 0
        %v1002 = vmul.f32 %v998, %v1000
        %v1004 = vperm.slane %v969, 0
        %v1006 = vadd.f32 %v1002, %v1004
        %v1007 = vpack.c.bf16 %v1006, %v1006
        %v1008 = vld [vmem:[#allocation6] sm:$0xf]
        %v1009 = vld [vmem:[#allocation6 + $0x4] sm:$0xf]
        %v1010 = vld [vmem:[#allocation6 + $0x8] sm:$0xf]
        %v1011 = vld [vmem:[#allocation6 + $0xc] sm:$0xf]
        %v1012 = vld [vmem:[%s8] sm:$0x1]
        %v1014 = vperm.slane %v1012, 0
        %v1020 = vunpack.c.l.b16 %v1008
        %v1021 = vunpack.c.l.b16 %v1009
        %v1022 = vunpack.c.l.b16 %v1010
        %v1023 = vunpack.c.l.b16 %v1011
        %v1024 = vpack.c.b16 %v1021, %v1020
        %v1025 = vpack.c.b16 %v1023, %v1022
        %v1029 = vsel %vm587, %v1007, 0
        %1031 = vmatpush.bf16.msra.mxu0 0
        %1032 = vmatpush.bf16.msra.mxu0 0
        %1033 = vmatpush.bf16.msra.mxu0 0
        %1034 = vmatpush.bf16.msra.mxu0 0
        %1035 = vmatpush.bf16.msra.mxu0 0
        %1036 = vmatpush.bf16.msra.mxu0 0
        %1037 = vmatpush.bf16.msra.mxu0 %v1025
        %1038 = vmatpush.bf16.msra.mxu0 %v1024
        %1039 = vmatmul.bf16.gmra.mxu0 %v1029
        %v1040 = vpop.f32.mrf.mxu0
        %v1041 = vadd.f32 %v1014, %v1040
        %v1042 = vpop.f32.mrf.mxu0
        %1043 = vdwg.mxu0
        %v1044 = vmax.f32 %v1041, 0.0
        %v1045 = vpack.c.bf16 %v1044, %v1044
        %v1046 = vld [vmem:[%s9] sm:$0xf]
        %v1047 = vld [vmem:[%s9 + $0x4] sm:$0xf]
        %v1048 = vld [vmem:[%s9 + $0x8] sm:$0xf]
        %v1049 = vld [vmem:[%s9 + $0xc] sm:$0xf]
        %v1050 = vld [vmem:[%s9 + $0x10] sm:$0xf]
        %v1051 = vld [vmem:[%s9 + $0x14] sm:$0xf]
        %v1052 = vld [vmem:[%s9 + $0x18] sm:$0xf]
        %v1053 = vld [vmem:[%s9 + $0x1c] sm:$0xf]
        %v1054 = vld [vmem:[%s9 + $0x20] sm:$0xf]
        %v1055 = vld [vmem:[%s9 + $0x24] sm:$0xf]
        %v1056 = vld [vmem:[%s9 + $0x28] sm:$0xf]
        %v1057 = vld [vmem:[%s9 + $0x2c] sm:$0xf]
        %v1058 = vld [vmem:[%s9 + $0x30] sm:$0xf]
        %v1059 = vld [vmem:[%s9 + $0x34] sm:$0xf]
        %v1060 = vld [vmem:[%s9 + $0x38] sm:$0xf]
        %v1061 = vld [vmem:[%s9 + $0x3c] sm:$0xf]
        %v1062 = vld [vmem:[%s10] sm:$0x1]
        %v1064 = vperm.slane %v1062, 0
        %v1082 = vunpack.c.l.b16 %v1046
        %v1083 = vunpack.c.l.b16 %v1047
        %v1084 = vunpack.c.l.b16 %v1048
        %v1085 = vunpack.c.l.b16 %v1049
        %v1086 = vunpack.c.l.b16 %v1050
        %v1087 = vunpack.c.l.b16 %v1051
        %v1088 = vunpack.c.l.b16 %v1052
        %v1089 = vunpack.c.l.b16 %v1053
        %v1090 = vunpack.c.l.b16 %v1054
        %v1091 = vunpack.c.l.b16 %v1055
        %v1092 = vunpack.c.l.b16 %v1056
        %v1093 = vunpack.c.l.b16 %v1057
        %v1094 = vunpack.c.l.b16 %v1058
        %v1095 = vunpack.c.l.b16 %v1059
        %v1096 = vunpack.c.l.b16 %v1060
        %v1097 = vunpack.c.l.b16 %v1061
        %v1098 = vpack.c.b16 %v1083, %v1082
        %v1099 = vpack.c.b16 %v1085, %v1084
        %v1100 = vpack.c.b16 %v1087, %v1086
        %v1101 = vpack.c.b16 %v1089, %v1088
        %v1102 = vpack.c.b16 %v1091, %v1090
        %v1103 = vpack.c.b16 %v1093, %v1092
        %v1104 = vpack.c.b16 %v1095, %v1094
        %v1105 = vpack.c.b16 %v1097, %v1096
        %1114 = vmatpush.bf16.msra.mxu0 %v1105
        %1115 = vmatpush.bf16.msra.mxu0 %v1104
        %1116 = vmatpush.bf16.msra.mxu0 %v1103
        %1117 = vmatpush.bf16.msra.mxu0 %v1102
        %1118 = vmatpush.bf16.msra.mxu0 %v1101
        %1119 = vmatpush.bf16.msra.mxu0 %v1100
        %1120 = vmatpush.bf16.msra.mxu0 %v1099
        %1121 = vmatpush.bf16.msra.mxu0 %v1098
        %1122 = vmatmul.bf16.gmra.mxu0 %v1045
        %v1123 = vpop.f32.mrf.mxu0
        %v1124 = vadd.f32 %v1064, %v1123
        %v1125 = vpop.f32.mrf.mxu0
        %1126 = vdwg.mxu0
        %v1127 = vadd.f32 %v1006, %v1124
        %v1128 = vld [vmem:[%s13] sm:$0x1]
        %v1129 = vld [vmem:[%s14] sm:$0x1]
        %v1130 = vsel %vm587, %v1127, 0.0
        %1131 = vadd.xlane.f32.xlu0 %v1130
        %v1132 = vpop.xlane.xlu0 %1131
        %v1133 = vmul.f32 %v1132, %v979
        %v1134 = vsub.f32 %v1127, %v1133
        %v1135 = vmul.f32 %v1134, %v1134
        %v1136 = vsel %vm587, %v1135, 0.0
        %1137 = vadd.xlane.f32.xlu0 %v1136
        %v1138 = vpop.xlane.xlu0 %1137
        %v1139 = vmul.f32 %v1138, %v979
        %v1140 = vadd.f32 %v1139, 1e-05
        %v1141 = vrsqrt.pop %v1140
        %v1142 = vmul.f32 %v1141, %v1140
        %v1143 = vmul.f32 %v1142, %v1141
        %v1144 = vmul.f32 0.5, %v1143
        %v1145 = vsub.f32 1.5, %v1144
        %v1146 = vmul.f32 %v1141, %v1145
        %vm1147 = vweird.f32 %v1140
        %vm1148 = vweird.f32 %v1141
        %vm1149 = vmor %vm1147, %vm1148
        %v1150 = vsel %vm1149, %v1141, %v1146
        %v1151 = vmul.f32 %v1134, %v1150
        %v1153 = vperm.slane %v1128, 0
        %v1155 = vmul.f32 %v1151, %v1153
        %v1157 = vperm.slane %v1129, 0
        %v1159 = vadd.f32 %v1155, %v1157
        %1160 = vst.msk [vmem:[%s554] sm:$0xff] %vm587, %v1159
        %s1161 = sand.u32 %s380, 1
        %s1162 = scalar_lea.sflag [#allocation5], %s1161
        %s1163 = sand.u32 %s380, 1
        %s1164 = smul.addr %s1163, 8
        %s1165 = scalar_lea.vmem [#allocation8], %s1164
        // Predicated region
        $region89: #{tpu_custom_call.1} parent=79 // pred_check
          %p1166 = pneg %p390
        $region90: #{tpu_custom_call.1} parent=79 // pred_check_branch
          %1168 = sbr.rel (%p1166) target = $region92
        $region91: #{tpu_custom_call.1} parent=79 // pred_region
          %1170 = vsyncadd %s1162, 0
          %s1171 = sadd.s32 %s36, %s35
          %s1172 = smul.addr %s1171, 8
          %s1173 = scalar_lea.hbm %s15, %s1172
          %s1175 = sshll.u32 %s1165, 4
          %s1176 = int_to_ptr.vmem [resolvable:$true] %s1175
          %s1177 = sshll.u32 %s1173, 4
          %s1178 = int_to_ptr.hbm [resolvable:$true] %s1177
          %1180 = dma.vmem_to_hbm [thread:$0]  %s1176, 128, %s1178, %s1162
        $region92: #{tpu_custom_call.1} parent=79 // pred_fallthru
          _
      $region80: #{tpu_custom_call.1} parent=5 // pred_fallthru
        _
      %p1181 = scmp.le.s32.totalorder 2, %s26
      // Predicated region
      $region93: #{tpu_custom_call.1} parent=5 // pred_check
        %p1182 = pneg %p1181
      $region94: #{tpu_custom_call.1} parent=5 // pred_check_branch
        %1184 = sbr.rel (%p1182) target = $region96
      $region95: #{tpu_custom_call.1} parent=5 // pred_region
        %s1185 = ssub.s32 %s26, 2
        // Predicated region
        $region97: #{tpu_custom_call.1} parent=95 // pred_check
          %p1186 = pneg %p396
        $region98: #{tpu_custom_call.1} parent=95 // pred_check_branch
          %1188 = sbr.rel (%p1186) target = $region100
        $region99: #{tpu_custom_call.1} parent=95 // pred_region
          %s1189 = sand.u32 %s381, 1
          %s1190 = scalar_lea.sflag [#allocation5], %s1189
          %s1191 = sand.u32 %s381, 1
          %s1192 = smul.addr %s1191, 8
          %s1193 = scalar_lea.vmem [#allocation8], %s1192
          %1195 = dma.done %s1190, 128
        $region100: #{tpu_custom_call.1} parent=95 // pred_fallthru
          _
      $region96: #{tpu_custom_call.1} parent=5 // pred_fallthru
        _
    $region6: #{tpu_custom_call.1} parent=1 // loop_footer
      %s30 = sadd.s32 1, %s26
    $region7: #{tpu_custom_call.1} parent=1 // loop_footer_branch
      %25 = sbr.rel target = $region3
    $region8: #{tpu_custom_call.1} parent=1 // loop_exit
      _
    %1196 = vsyncpa [#allocation4], 1
    %s1197 = scalar_lea.sflag [#allocation4], 1
    %1198 = vsyncpa %s1197, 1
    %1199 = vsyncpa [#allocation7], 1
    %1200 = vsyncpa [#allocation5], 1
    %s1201 = scalar_lea.sflag [#allocation5], 1
    %1202 = vsyncpa %s1201, 1

</llo_original>
